<compile_context>
chip_gen: v5e
topology: v5e:2x2
jax: 0.10.0
libtpu: 0.0.40
codegen_flags: <defaults>
</compile_context>

<pallas_src>
import jax
import jax.numpy as jnp
from jax.experimental import pallas as pl
from jax.experimental.pallas import tpu as pltpu

# ----------------------------- model dims -----------------------------------
NUM_NODES = 16
INPUT_DIM = 16
HIDDEN_DIM = 32
OUTPUT_DIM = 8
NUM_LAYERS = 2
BN_EPS = 1e-5
GIN_EPS = 0.0          # PyG GINConv default

# ----------------------------- batching / layout ------------------------------
PAD_DIM = 128                          # lane-dense feature width inside the kernel
GPS = 8                                # graphs per grid step
M_ROWS = GPS * NUM_NODES               # 128 node rows per grid step (fills MXU rows)
B_STEPS = 4                            # grid length -> 32 graphs total
TOTAL_GRAPHS = B_STEPS * GPS
assert M_ROWS == PAD_DIM               # pooling block reuses the 128-lane width

# packed parameter slab:
#   5 weight matrices as [32, 128] blocks, 7 bias/BN rows in one 8-row block,
#   then the [128, 128] block-diagonal per-graph mean-pooling matrix.
MAT_ROWS = 32                          # >= max(INPUT_DIM, HIDDEN_DIM), multiple of 8
N_MATS = 2 * NUM_LAYERS + 1            # w1, w2 per layer + output projection
VEC_OFF = N_MATS * MAT_ROWS            # 160
N_VECS = 3 * NUM_LAYERS + 1            # b1, gamma, beta per layer + output bias
VEC_BLOCK = 8                          # vec rows padded to one 8-row sublane block
POOL_OFF = VEC_OFF + VEC_BLOCK         # 168
SLAB_ROWS = POOL_OFF + M_ROWS          # 296 rows -> ~148 KiB f32 (was 356 KiB)


# ----------------------------- Pallas kernel --------------------------------
def gin_forward_kernel(a_ref, x_ref, slab_ref, out_ref):
    # a_ref:    [M_ROWS, M_ROWS]    block-diagonal adjacency, (1+eps)*I folded in
    # x_ref:    [M_ROWS, PAD_DIM]   node features, zero-padded to 128 lanes
    # slab_ref: [SLAB_ROWS, PAD_DIM] all parameters + pooling matrix (resident)
    # out_ref:  [M_ROWS, PAD_DIM]   lane-dense output (cols >= OUTPUT_DIM are zero)
    a = a_ref[...]
    h = x_ref[...]
    pool = slab_ref[pl.ds(POOL_OFF, M_ROWS), :]     # per-graph mean pooling matrix

    def mat(i):                                     # [32, 128] weight block (static slice)
        return slab_ref[pl.ds(i * MAT_ROWS, MAT_ROWS), :]

    def vec(i):                                     # [1, 128] bias / BN row (static slice)
        return slab_ref[pl.ds(VEC_OFF + i, 1), :]

    for li in range(NUM_LAYERS):
        w1 = mat(2 * li)
        w2 = mat(2 * li + 1)
        b1 = vec(3 * li)
        gamma = vec(3 * li + 1)
        beta = vec(3 * li + 2)

        # GIN aggregation for all GPS graphs at once: the block-diagonal
        # adjacency (with the (1+eps) self term pre-folded) is one MXU matmul.
        agg = jnp.dot(a, h, preferred_element_type=jnp.float32)

        # MLP: Linear -> ReLU -> Linear. Contraction restricted to the 32 real
        # lanes so the weights can live as [32, 128] slab blocks.
        z = jnp.dot(agg[:, :MAT_ROWS], w1, preferred_element_type=jnp.float32) + b1
        z = jnp.maximum(z, 0.0)
        z = jnp.dot(z[:, :MAT_ROWS], w2, preferred_element_type=jnp.float32)
        # (second Linear bias dropped: it cancels with the BN mean subtraction)

        # Per-graph BatchNorm1d (training-mode batch stats) + ReLU fused in
        # scale/shift form. `pool` broadcasts each graph's node-mean back to its
        # own 16 rows, so statistics never mix across graphs in the batch.
        mean = jnp.dot(pool, z, preferred_element_type=jnp.float32)
        mean_sq = jnp.dot(pool, z * z, preferred_element_type=jnp.float32)
        var = mean_sq - mean * mean
        scale = gamma * jax.lax.rsqrt(var + BN_EPS)      # EUP rsqrt; gamma=0 pads -> 0
        shift = beta - mean * scale
        h = jnp.maximum(z * scale + shift, 0.0)

    wo = mat(2 * NUM_LAYERS)
    bo = vec(3 * NUM_LAYERS)
    out = jnp.dot(h[:, :MAT_ROWS], wo, preferred_element_type=jnp.float32) + bo
    out_ref[...] = out.astype(out_ref.dtype)


def _cost_estimate():
    mm = lambda m, k, n: 2 * m * k * n
    per_layer = (mm(M_ROWS, M_ROWS, PAD_DIM)            # adjacency aggregation
                 + 2 * mm(M_ROWS, MAT_ROWS, PAD_DIM)    # MLP matmuls
                 + 2 * mm(M_ROWS, M_ROWS, PAD_DIM)      # BN pooled mean / E[z^2]
                 + 8 * M_ROWS * PAD_DIM)                # elementwise
    flops = B_STEPS * (NUM_LAYERS * per_layer + mm(M_ROWS, MAT_ROWS, PAD_DIM))
    transcendentals = B_STEPS * NUM_LAYERS * M_ROWS * PAD_DIM   # rsqrt
    bytes_accessed = 4 * (SLAB_ROWS * PAD_DIM
                          + B_STEPS * (M_ROWS * M_ROWS + 2 * M_ROWS * PAD_DIM))
    return pl.CostEstimate(flops=flops, transcendentals=transcendentals,
                           bytes_accessed=bytes_accessed)


_COST = _cost_estimate()


@jax.jit
def gin_forward(adj_blk, x_blk, slab):
    """Batched GIN forward; returns [B_STEPS, GPS, NUM_NODES, OUTPUT_DIM]."""
    adj_spec = pl.BlockSpec((None, M_ROWS, M_ROWS), lambda b: (b, 0, 0))
    x_spec = pl.BlockSpec((None, M_ROWS, PAD_DIM), lambda b: (b, 0, 0))
    # Constant index_map -> the slab is DMA'd once and stays resident in VMEM.
    slab_spec = pl.BlockSpec((SLAB_ROWS, PAD_DIM), lambda b: (0, 0))
    out_spec = pl.BlockSpec((None, M_ROWS, PAD_DIM), lambda b: (b, 0, 0))

    out_pad = pl.pallas_call(
        gin_forward_kernel,
        grid=(B_STEPS,),
        in_specs=[adj_spec, x_spec, slab_spec],
        out_specs=out_spec,
        out_shape=jax.ShapeDtypeStruct((B_STEPS, M_ROWS, PAD_DIM), jnp.float32),
        compiler_params=pltpu.CompilerParams(dimension_semantics=("parallel",)),
        cost_estimate=_COST,
    )(adj_blk, x_blk, slab)
    # Kernel stores a lane-dense 128-wide slab; trim padding and split graphs here.
    return out_pad[:, :, :OUTPUT_DIM].reshape(B_STEPS, GPS, NUM_NODES, OUTPUT_DIM)


# ----------------------------- parameter setup -------------------------------
def init_params(key):
    """Deterministic synthetic parameters (Linear weights stored as [in, out])."""
    params = []
    keys = jax.random.split(key, 4 * NUM_LAYERS + 2)
    ki = 0
    in_dim = INPUT_DIM
    for _ in range(NUM_LAYERS):
        w1 = jax.random.normal(keys[ki], (in_dim, HIDDEN_DIM), jnp.float32) * 0.1; ki += 1
        b1 = jax.random.normal(keys[ki], (1, HIDDEN_DIM), jnp.float32) * 0.1;      ki += 1
        w2 = jax.random.normal(keys[ki], (HIDDEN_DIM, HIDDEN_DIM), jnp.float32) * 0.1; ki += 1
        b2 = jax.random.normal(keys[ki], (1, HIDDEN_DIM), jnp.float32) * 0.1;      ki += 1
        gamma = jnp.ones((1, HIDDEN_DIM), jnp.float32)   # BatchNorm1d default affine
        beta = jnp.zeros((1, HIDDEN_DIM), jnp.float32)
        params += [w1, b1, w2, b2, gamma, beta]
        in_dim = HIDDEN_DIM
    wo = jax.random.normal(keys[ki], (HIDDEN_DIM, OUTPUT_DIM), jnp.float32) * 0.1; ki += 1
    bo = jax.random.normal(keys[ki], (1, OUTPUT_DIM), jnp.float32) * 0.1
    params += [wo, bo]
    return params


def pack_params(params):
    """Pack parameters + pooling matrix into one zero-padded [SLAB_ROWS, 128] slab."""
    mats, vecs = [], []
    for l in range(NUM_LAYERS):
        w1, b1, w2, b2, gamma, beta = params[6 * l: 6 * l + 6]
        mats += [w1, w2]
        vecs += [b1, gamma, beta]          # b2 intentionally dropped (cancels under BN)
    wo, bo = params[-2], params[-1]
    mats.append(wo)
    vecs.append(bo)

    slab = jnp.zeros((SLAB_ROWS, PAD_DIM), jnp.float32)
    for i, m in enumerate(mats):
        r, c = m.shape
        slab = slab.at[i * MAT_ROWS: i * MAT_ROWS + r, :c].set(m)
    for i, v in enumerate(vecs):
        c = v.shape[1]
        slab = slab.at[VEC_OFF + i: VEC_OFF + i + 1, :c].set(v)
    # Block-diagonal per-graph mean-pooling matrix (1/NUM_NODES within a graph).
    pool = jnp.kron(jnp.eye(GPS, dtype=jnp.float32),
                    jnp.ones((NUM_NODES, NUM_NODES), jnp.float32)) / NUM_NODES
    slab = slab.at[POOL_OFF: POOL_OFF + M_ROWS, :M_ROWS].set(pool)
    return slab


# ----------------------------- graph construction ----------------------------
def random_edge_index(key, num_nodes, num_chords=4):
    """Deterministic small graph: a ring plus random chords. Returns [2, E]."""
    ks, kd = jax.random.split(key)
    chord_src = jax.random.randint(ks, (num_chords,), 0, num_nodes, dtype=jnp.int32)
    chord_dst = jax.random.randint(kd, (num_chords,), 0, num_nodes, dtype=jnp.int32)
    ring_src = jnp.arange(num_nodes, dtype=jnp.int32)
    ring_dst = (ring_src + 1) % num_nodes
    return jnp.stack([jnp.concatenate([ring_src, chord_src]),
                      jnp.concatenate([ring_dst, chord_dst])])


def build_adjacency(edge_index, num_nodes):
    """edge_index: [2, E]; symmetrize (cat with flip) and densify (sum aggregation)."""
    src = jnp.concatenate([edge_index[0], edge_index[1]])
    dst = jnp.concatenate([edge_index[1], edge_index[0]])
    adj = jnp.zeros((num_nodes, num_nodes), jnp.float32)
    adj = adj.at[dst, src].add(1.0)
    return adj


# ----------------------------- reference (plain JAX) -------------------------
def gin_forward_ref(adj, x, params):
    hp = jax.lax.Precision.HIGHEST
    h = x
    for l in range(NUM_LAYERS):
        w1, b1, w2, b2, gamma, beta = params[6 * l: 6 * l + 6]
        agg = jnp.dot(adj, h, precision=hp) + (1.0 + GIN_EPS) * h
        z = jnp.maximum(jnp.dot(agg, w1, precision=hp) + b1, 0.0)
        z = jnp.dot(z, w2, precision=hp) + b2
        mean = jnp.mean(z, axis=0, keepdims=True)
        var = jnp.mean((z - mean) ** 2, axis=0, keepdims=True)
        z = gamma * (z - mean) / jnp.sqrt(var + BN_EPS) + beta
        h = jnp.maximum(z, 0.0)
    wo, bo = params[-2], params[-1]
    return jnp.dot(h, wo, precision=hp) + bo


# ----------------------------- main ------------------------------------------
if __name__ == "__main__":
    key = jax.random.PRNGKey(0)
    k_graphs, k_params = jax.random.split(key)
    graph_keys = jax.random.split(k_graphs, TOTAL_GRAPHS)

    # Per-graph adjacencies (dense [16, 16]).
    adjs = [build_adjacency(random_edge_index(graph_keys[g], NUM_NODES), NUM_NODES)
            for g in range(TOTAL_GRAPHS)]

    # Block-diagonal adjacency per grid step with the GIN self-term folded in.
    self_term = (1.0 + GIN_EPS) * jnp.eye(NUM_NODES, dtype=jnp.float32)
    adj_blk = jnp.zeros((B_STEPS, M_ROWS, M_ROWS), jnp.float32)
    for b in range(B_STEPS):
        for gi in range(GPS):
            a_hat = adjs[b * GPS + gi] + self_term
            r = gi * NUM_NODES
            adj_blk = adj_blk.at[b, r:r + NUM_NODES, r:r + NUM_NODES].set(a_hat)

    # x = torch.eye(NUM_NODES, INPUT_DIM) per graph, zero-padded to 128 lanes.
    x = jnp.eye(NUM_NODES, INPUT_DIM, dtype=jnp.float32)
    x_pad = jnp.zeros((NUM_NODES, PAD_DIM), jnp.float32).at[:, :INPUT_DIM].set(x)
    x_blk = jnp.tile(x_pad, (B_STEPS, GPS, 1))          # [B_STEPS, 128, 128]

    params = init_params(k_params)
    slab = pack_params(params)

    out = gin_forward(adj_blk, x_blk, slab)             # [B_STEPS, GPS, 16, 8]
    out = jax.block_until_ready(out)
    assert out.shape == (B_STEPS, GPS, NUM_NODES, OUTPUT_DIM)

    # Per-graph correctness against a plain-JAX (full f32 precision) reference.
    for b in range(B_STEPS):
        for gi in range(GPS):
            ref = gin_forward_ref(adjs[b * GPS + gi], x, params)
            assert jnp.allclose(out[b, gi], ref, atol=1e-3, rtol=1e-3), \
                f"Pallas output mismatch vs JAX reference (graph {b * GPS + gi})"

    print("KERNEL_OK")
</pallas_src>

<mosaic_0001>
module attributes {stable_mosaic.version = 11 : i64} {
  func.func @gin_forward_kernel(%arg0: i32, %arg1: memref<1x128x128xf32, #tpu.memory_space<vmem>>, %arg2: memref<1x128x128xf32, #tpu.memory_space<vmem>>, %arg3: memref<296x128xf32, #tpu.memory_space<vmem>>, %arg4: memref<1x128x128xf32, #tpu.memory_space<vmem>>) attributes {dimension_semantics = [#tpu.dimension_semantics<parallel>], iteration_bounds = array<i64: 4>, scalar_prefetch = 0 : i64, scratch_operands = 0 : i64, tpu.core_type = #tpu.core_type<tc>, window_params = [{transform_indices = @transform_0, window_bounds = array<i64: 1, 128, 128>}, {transform_indices = @transform_1, window_bounds = array<i64: 1, 128, 128>}, {pipeline_mode = #tpu.pipeline_mode<synchronous>, transform_indices = @transform_2, window_bounds = array<i64: 296, 128>}, {transform_indices = @transform_3, window_bounds = array<i64: 1, 128, 128>}]} {
    %c0 = arith.constant 0 : index
    %c0_0 = arith.constant 0 : index
    %c0_1 = arith.constant 0 : index
    %0 = vector.load %arg1[%c0, %c0_0, %c0_1] : memref<1x128x128xf32, #tpu.memory_space<vmem>>, vector<1x128x128xf32>
    %1 = vector.shape_cast %0 : vector<1x128x128xf32> to vector<128x128xf32>
    %c0_2 = arith.constant 0 : index
    %c0_3 = arith.constant 0 : index
    %c0_4 = arith.constant 0 : index
    %2 = vector.load %arg2[%c0_2, %c0_3, %c0_4] : memref<1x128x128xf32, #tpu.memory_space<vmem>>, vector<1x128x128xf32>
    %3 = vector.shape_cast %2 : vector<1x128x128xf32> to vector<128x128xf32>
    %c168 = arith.constant 168 : index
    %c0_5 = arith.constant 0 : index
    %4 = vector.load %arg3[%c168, %c0_5] : memref<296x128xf32, #tpu.memory_space<vmem>>, vector<128x128xf32>
    %c0_6 = arith.constant 0 : index
    %c0_7 = arith.constant 0 : index
    %5 = vector.load %arg3[%c0_6, %c0_7] : memref<296x128xf32, #tpu.memory_space<vmem>>, vector<32x128xf32>
    %c32 = arith.constant 32 : index
    %c0_8 = arith.constant 0 : index
    %6 = vector.load %arg3[%c32, %c0_8] : memref<296x128xf32, #tpu.memory_space<vmem>>, vector<32x128xf32>
    %c160 = arith.constant 160 : index
    %c0_9 = arith.constant 0 : index
    %7 = vector.load %arg3[%c160, %c0_9] : memref<296x128xf32, #tpu.memory_space<vmem>>, vector<1x128xf32>
    %c161 = arith.constant 161 : index
    %c0_10 = arith.constant 0 : index
    %8 = vector.load %arg3[%c161, %c0_10] : memref<296x128xf32, #tpu.memory_space<vmem>>, vector<1x128xf32>
    %c162 = arith.constant 162 : index
    %c0_11 = arith.constant 0 : index
    %9 = vector.load %arg3[%c162, %c0_11] : memref<296x128xf32, #tpu.memory_space<vmem>>, vector<1x128xf32>
    %cst = arith.constant dense<0.000000e+00> : vector<128x128xf32>
    %10 = tpu.matmul %1, %3, %cst {dimension_numbers = #tpu.dot_dimension_numbers<[1], [0], [0], [1], [0, 0, 1, 1], [], []>} : vector<128x128xf32>, vector<128x128xf32>, vector<128x128xf32> -> vector<128x128xf32>
    %11 = vector.extract_strided_slice %10 {offsets = [0, 0], sizes = [128, 32], strides = [1, 1]} : vector<128x128xf32> to vector<128x32xf32>
    %cst_12 = arith.constant dense<0.000000e+00> : vector<128x128xf32>
    %12 = tpu.matmul %11, %5, %cst_12 {dimension_numbers = #tpu.dot_dimension_numbers<[1], [0], [0], [1], [0, 0, 1, 1], [], []>} : vector<128x32xf32>, vector<32x128xf32>, vector<128x128xf32> -> vector<128x128xf32>
    %13 = vector.broadcast %7 : vector<1x128xf32> to vector<128x128xf32>
    %14 = arith.addf %12, %13 : vector<128x128xf32>
    %cst_13 = arith.constant 0.000000e+00 : f32
    %15 = vector.broadcast %cst_13 : f32 to vector<128x128xf32>
    %16 = arith.maximumf %14, %15 : vector<128x128xf32>
    %17 = vector.extract_strided_slice %16 {offsets = [0, 0], sizes = [128, 32], strides = [1, 1]} : vector<128x128xf32> to vector<128x32xf32>
    %cst_14 = arith.constant dense<0.000000e+00> : vector<128x128xf32>
    %18 = tpu.matmul %17, %6, %cst_14 {dimension_numbers = #tpu.dot_dimension_numbers<[1], [0], [0], [1], [0, 0, 1, 1], [], []>} : vector<128x32xf32>, vector<32x128xf32>, vector<128x128xf32> -> vector<128x128xf32>
    %cst_15 = arith.constant dense<0.000000e+00> : vector<128x128xf32>
    %19 = tpu.matmul %4, %18, %cst_15 {dimension_numbers = #tpu.dot_dimension_numbers<[1], [0], [0], [1], [0, 0, 1, 1], [], []>} : vector<128x128xf32>, vector<128x128xf32>, vector<128x128xf32> -> vector<128x128xf32>
    %20 = arith.mulf %18, %18 : vector<128x128xf32>
    %cst_16 = arith.constant dense<0.000000e+00> : vector<128x128xf32>
    %21 = tpu.matmul %4, %20, %cst_16 {dimension_numbers = #tpu.dot_dimension_numbers<[1], [0], [0], [1], [0, 0, 1, 1], [], []>} : vector<128x128xf32>, vector<128x128xf32>, vector<128x128xf32> -> vector<128x128xf32>
    %22 = arith.mulf %19, %19 : vector<128x128xf32>
    %23 = arith.subf %21, %22 : vector<128x128xf32>
    %cst_17 = arith.constant 9.99999974E-6 : f32
    %24 = vector.broadcast %cst_17 : f32 to vector<128x128xf32>
    %25 = arith.addf %23, %24 : vector<128x128xf32>
    %26 = math.rsqrt %25 : vector<128x128xf32>
    %27 = vector.broadcast %8 : vector<1x128xf32> to vector<128x128xf32>
    %28 = arith.mulf %27, %26 : vector<128x128xf32>
    %29 = arith.mulf %19, %28 : vector<128x128xf32>
    %30 = vector.broadcast %9 : vector<1x128xf32> to vector<128x128xf32>
    %31 = arith.subf %30, %29 : vector<128x128xf32>
    %32 = arith.mulf %18, %28 : vector<128x128xf32>
    %33 = arith.addf %32, %31 : vector<128x128xf32>
    %cst_18 = arith.constant 0.000000e+00 : f32
    %34 = vector.broadcast %cst_18 : f32 to vector<128x128xf32>
    %35 = arith.maximumf %33, %34 : vector<128x128xf32>
    %c64 = arith.constant 64 : index
    %c0_19 = arith.constant 0 : index
    %36 = vector.load %arg3[%c64, %c0_19] : memref<296x128xf32, #tpu.memory_space<vmem>>, vector<32x128xf32>
    %c96 = arith.constant 96 : index
    %c0_20 = arith.constant 0 : index
    %37 = vector.load %arg3[%c96, %c0_20] : memref<296x128xf32, #tpu.memory_space<vmem>>, vector<32x128xf32>
    %c163 = arith.constant 163 : index
    %c0_21 = arith.constant 0 : index
    %38 = vector.load %arg3[%c163, %c0_21] : memref<296x128xf32, #tpu.memory_space<vmem>>, vector<1x128xf32>
    %c164 = arith.constant 164 : index
    %c0_22 = arith.constant 0 : index
    %39 = vector.load %arg3[%c164, %c0_22] : memref<296x128xf32, #tpu.memory_space<vmem>>, vector<1x128xf32>
    %c165 = arith.constant 165 : index
    %c0_23 = arith.constant 0 : index
    %40 = vector.load %arg3[%c165, %c0_23] : memref<296x128xf32, #tpu.memory_space<vmem>>, vector<1x128xf32>
    %cst_24 = arith.constant dense<0.000000e+00> : vector<128x128xf32>
    %41 = tpu.matmul %1, %35, %cst_24 {dimension_numbers = #tpu.dot_dimension_numbers<[1], [0], [0], [1], [0, 0, 1, 1], [], []>} : vector<128x128xf32>, vector<128x128xf32>, vector<128x128xf32> -> vector<128x128xf32>
    %42 = vector.extract_strided_slice %41 {offsets = [0, 0], sizes = [128, 32], strides = [1, 1]} : vector<128x128xf32> to vector<128x32xf32>
    %cst_25 = arith.constant dense<0.000000e+00> : vector<128x128xf32>
    %43 = tpu.matmul %42, %36, %cst_25 {dimension_numbers = #tpu.dot_dimension_numbers<[1], [0], [0], [1], [0, 0, 1, 1], [], []>} : vector<128x32xf32>, vector<32x128xf32>, vector<128x128xf32> -> vector<128x128xf32>
    %44 = vector.broadcast %38 : vector<1x128xf32> to vector<128x128xf32>
    %45 = arith.addf %43, %44 : vector<128x128xf32>
    %cst_26 = arith.constant 0.000000e+00 : f32
    %46 = vector.broadcast %cst_26 : f32 to vector<128x128xf32>
    %47 = arith.maximumf %45, %46 : vector<128x128xf32>
    %48 = vector.extract_strided_slice %47 {offsets = [0, 0], sizes = [128, 32], strides = [1, 1]} : vector<128x128xf32> to vector<128x32xf32>
    %cst_27 = arith.constant dense<0.000000e+00> : vector<128x128xf32>
    %49 = tpu.matmul %48, %37, %cst_27 {dimension_numbers = #tpu.dot_dimension_numbers<[1], [0], [0], [1], [0, 0, 1, 1], [], []>} : vector<128x32xf32>, vector<32x128xf32>, vector<128x128xf32> -> vector<128x128xf32>
    %cst_28 = arith.constant dense<0.000000e+00> : vector<128x128xf32>
    %50 = tpu.matmul %4, %49, %cst_28 {dimension_numbers = #tpu.dot_dimension_numbers<[1], [0], [0], [1], [0, 0, 1, 1], [], []>} : vector<128x128xf32>, vector<128x128xf32>, vector<128x128xf32> -> vector<128x128xf32>
    %51 = arith.mulf %49, %49 : vector<128x128xf32>
    %cst_29 = arith.constant dense<0.000000e+00> : vector<128x128xf32>
    %52 = tpu.matmul %4, %51, %cst_29 {dimension_numbers = #tpu.dot_dimension_numbers<[1], [0], [0], [1], [0, 0, 1, 1], [], []>} : vector<128x128xf32>, vector<128x128xf32>, vector<128x128xf32> -> vector<128x128xf32>
    %53 = arith.mulf %50, %50 : vector<128x128xf32>
    %54 = arith.subf %52, %53 : vector<128x128xf32>
    %cst_30 = arith.constant 9.99999974E-6 : f32
    %55 = vector.broadcast %cst_30 : f32 to vector<128x128xf32>
    %56 = arith.addf %54, %55 : vector<128x128xf32>
    %57 = math.rsqrt %56 : vector<128x128xf32>
    %58 = vector.broadcast %39 : vector<1x128xf32> to vector<128x128xf32>
    %59 = arith.mulf %58, %57 : vector<128x128xf32>
    %60 = arith.mulf %50, %59 : vector<128x128xf32>
    %61 = vector.broadcast %40 : vector<1x128xf32> to vector<128x128xf32>
    %62 = arith.subf %61, %60 : vector<128x128xf32>
    %63 = arith.mulf %49, %59 : vector<128x128xf32>
    %64 = arith.addf %63, %62 : vector<128x128xf32>
    %cst_31 = arith.constant 0.000000e+00 : f32
    %65 = vector.broadcast %cst_31 : f32 to vector<128x128xf32>
    %66 = arith.maximumf %64, %65 : vector<128x128xf32>
    %c128 = arith.constant 128 : index
    %c0_32 = arith.constant 0 : index
    %67 = vector.load %arg3[%c128, %c0_32] : memref<296x128xf32, #tpu.memory_space<vmem>>, vector<32x128xf32>
    %c166 = arith.constant 166 : index
    %c0_33 = arith.constant 0 : index
    %68 = vector.load %arg3[%c166, %c0_33] : memref<296x128xf32, #tpu.memory_space<vmem>>, vector<1x128xf32>
    %69 = vector.extract_strided_slice %66 {offsets = [0, 0], sizes = [128, 32], strides = [1, 1]} : vector<128x128xf32> to vector<128x32xf32>
    %cst_34 = arith.constant dense<0.000000e+00> : vector<128x128xf32>
    %70 = tpu.matmul %69, %67, %cst_34 {dimension_numbers = #tpu.dot_dimension_numbers<[1], [0], [0], [1], [0, 0, 1, 1], [], []>} : vector<128x32xf32>, vector<32x128xf32>, vector<128x128xf32> -> vector<128x128xf32>
    %71 = vector.broadcast %68 : vector<1x128xf32> to vector<128x128xf32>
    %72 = arith.addf %70, %71 : vector<128x128xf32>
    %c0_35 = arith.constant 0 : index
    %c0_36 = arith.constant 0 : index
    %c0_37 = arith.constant 0 : index
    %73 = vector.load %arg4[%c0_35, %c0_36, %c0_37] : memref<1x128x128xf32, #tpu.memory_space<vmem>>, vector<1x128x128xf32>
    %74 = vector.shape_cast %73 : vector<1x128x128xf32> to vector<128x128xf32>
    %75 = vector.shape_cast %72 : vector<128x128xf32> to vector<1x128x128xf32>
    tpu.vector_store %arg4[%c0_35, %c0_36, %c0_37], %75 {strides = array<i32>} : memref<1x128x128xf32, #tpu.memory_space<vmem>>, vector<1x128x128xf32>,
    return
  }
  func.func @transform_0(%arg0: i32) -> (i32, i32, i32) {
    %c0_i32 = arith.constant 0 : i32
    %c0_i32_0 = arith.constant 0 : i32
    %c0_i32_1 = arith.constant 0 : i32
    return %arg0, %c0_i32, %c0_i32_0 : i32, i32, i32
  }
  func.func @transform_1(%arg0: i32) -> (i32, i32, i32) {
    %c0_i32 = arith.constant 0 : i32
    %c0_i32_0 = arith.constant 0 : i32
    %c0_i32_1 = arith.constant 0 : i32
    return %arg0, %c0_i32, %c0_i32_0 : i32, i32, i32
  }
  func.func @transform_2(%arg0: i32) -> (i32, i32) {
    %c0_i32 = arith.constant 0 : i32
    %c0_i32_0 = arith.constant 0 : i32
    %c0_i32_1 = arith.constant 0 : i32
    return %c0_i32, %c0_i32_0 : i32, i32
  }
  func.func @transform_3(%arg0: i32) -> (i32, i32, i32) {
    %c0_i32 = arith.constant 0 : i32
    %c0_i32_0 = arith.constant 0 : i32
    %c0_i32_1 = arith.constant 0 : i32
    return %arg0, %c0_i32, %c0_i32_0 : i32, i32, i32
  }
}

</mosaic_0001>

<llo_original>
// kernel: gin_forward.1
$region0: #{gin_forward.1}
  #allocation0 [shape = 'u32[]', space=smem, size = 0x4, offset = 0x4, fixed_abs, tag = 'smem constant byte address 0x4 - core index']
  #allocation1 [shape = 'u32[72,128]{1,0:T(1,128)}', space=vmem, size = 0x9000, scoped, tag = 'internal scratch']
  %s0 = inlined_call_operand.hbm [shape: f32[4,128,128], index: 0, kind: input, shape index: {}]
  %s1 = inlined_call_operand.hbm [shape: f32[4,128,128], index: 1, kind: input, shape index: {}]
  %s2 = inlined_call_operand.hbm [shape: f32[296,128], index: 2, kind: input, shape index: {}]
  %s3 = inlined_call_operand.vmem [shape: f32[4,128,128], index: 3, kind: output, shape index: {}]
  %s4 = sld [smem:[#allocation0]]
  $region57: #{gin_forward.1} parent=0
    _
  %s6 = ssub.s32 1, %s4
  %s7 = scalar_select 0, %s6, %s4
  $region1: #{gin_forward.1} parent=0
    #allocation2 [shape = 'u8[131072]{0}', space=vmem, size = 0x20000, scoped, tag = 'input window, operand 0']
    #allocation3 [shape = 's32[2]{0}', space=sflag, size = 0x8, scoped, tag = 'scoped memory for gin_forward.1']
    #allocation4 [shape = 'u8[131072]{0}', space=vmem, size = 0x20000, scoped, tag = 'input window, operand 1']
    #allocation5 [shape = 's32[2]{0}', space=sflag, size = 0x8, scoped, tag = 'scoped memory for gin_forward.1']
    #allocation6 [shape = 'u8[151552]{0}', space=vmem, size = 0x25000, scoped, tag = 'input window, operand 2, single buffered']
    %8 = vsyncpa [#allocation3], 0
    %s9 = scalar_lea.sflag [#allocation3], 1
    %10 = vsyncpa %s9, 0
    %11 = vsyncpa [#allocation5], 0
    %s12 = scalar_lea.sflag [#allocation5], 1
    %13 = vsyncpa %s12, 0
    loop: start=0, step=1, limit=6
    $region2: #{gin_forward.1} parent=1 // loop_pre_header
      _
    $region3: #{gin_forward.1} parent=1 // loop_header
      %s15 = sphi 0, %s19
      %p16 = scmp.ge.s32.totalorder %s15, 6
      %s25 = sphi 0, %s27
      %s28 = sphi 0, %s25
      %s29 = sphi 0, %s28
      %s45 = sphi 0, %s29
      %s51 = sphi 0, %s53
      %s54 = sphi 0, %s51
      %s55 = sphi 0, %s54
      %s71 = sphi 0, %s55
      %s75 = sphi 0, %s75
      %s77 = sphi 0, %s75
      %s78 = sphi 0, %s77
      %s92 = sphi 0, %s78
      %s98 = sphi 0, %s100
      %s101 = sphi 0, %s98
      %s102 = sphi 0, %s101
      %s118 = sphi 0, %s102
    $region4: #{gin_forward.1} parent=1 // loop_header_branch
      %18 = sbr.rel (%p16) target = $region8
    $region5: #{gin_forward.1} parent=1 // loop_body
      %s20 = ssub.s32 %s15, 1
      %s21 = ssub.s32 %s15, 2
      %s22 = sadd.s32 %s15, 1
      %s23 = ssub.s32 %s15, %s22
      %p24 = scmp.eq.s32.totalorder %s23, 0
      %s26 = sadd.s32 %s25, 1
      %s27 = scalar_select %p24, %s25, %s26
      %p30 = pneg %p24
      %p31 = scmp.eq.s32.totalorder %s15, 3
      %p32 = por %p30, %p31
      %p33 = scmp.ne.s32.totalorder %s25, %s28
      %p34 = scmp.eq.s32.totalorder %s15, 0
      %p35 = por %p33, %p34
      %p36 = scmp.ne.s32.totalorder %s25, %s28
      %p37 = scmp.eq.s32.totalorder %s20, 3
      %p38 = por %p36, %p37
      %p39 = scmp.ne.s32.totalorder %s28, %s29
      %p40 = scmp.eq.s32.totalorder %s20, 0
      %p41 = por %p39, %p40
      %p42 = scmp.ne.s32.totalorder %s28, %s29
      %p43 = scmp.eq.s32.totalorder %s21, 3
      %p44 = por %p42, %p43
      %p46 = scmp.ne.s32.totalorder %s29, %s45
      %p47 = scmp.eq.s32.totalorder %s21, 0
      %p48 = por %p46, %p47
      %s49 = ssub.s32 %s15, %s22
      %p50 = scmp.eq.s32.totalorder %s49, 0
      %s52 = sadd.s32 %s51, 1
      %s53 = scalar_select %p50, %s51, %s52
      %p56 = pneg %p50
      %p57 = scmp.eq.s32.totalorder %s15, 3
      %p58 = por %p56, %p57
      %p59 = scmp.ne.s32.totalorder %s51, %s54
      %p60 = scmp.eq.s32.totalorder %s15, 0
      %p61 = por %p59, %p60
      %p62 = scmp.ne.s32.totalorder %s51, %s54
      %p63 = scmp.eq.s32.totalorder %s20, 3
      %p64 = por %p62, %p63
      %p65 = scmp.ne.s32.totalorder %s54, %s55
      %p66 = scmp.eq.s32.totalorder %s20, 0
      %p67 = por %p65, %p66
      %p68 = scmp.ne.s32.totalorder %s54, %s55
      %p69 = scmp.eq.s32.totalorder %s21, 3
      %p70 = por %p68, %p69
      %p72 = scmp.ne.s32.totalorder %s55, %s71
      %p73 = scmp.eq.s32.totalorder %s21, 0
      %p74 = por %p72, %p73
      %s76 = sadd.s32 %s75, 1
      %p79 = scmp.eq.s32.totalorder %s15, 3
      %p80 = scmp.ne.s32.totalorder %s75, %s77
      %p81 = scmp.eq.s32.totalorder %s15, 0
      %p82 = por %p80, %p81
      %p83 = scmp.ne.s32.totalorder %s75, %s77
      %p84 = scmp.eq.s32.totalorder %s20, 3
      %p85 = por %p83, %p84
      %p86 = scmp.ne.s32.totalorder %s77, %s78
      %p87 = scmp.eq.s32.totalorder %s20, 0
      %p88 = por %p86, %p87
      %p89 = scmp.ne.s32.totalorder %s77, %s78
      %p90 = scmp.eq.s32.totalorder %s21, 3
      %p91 = por %p89, %p90
      %p93 = scmp.ne.s32.totalorder %s78, %s92
      %p94 = scmp.eq.s32.totalorder %s21, 0
      %p95 = por %p93, %p94
      %s96 = ssub.s32 %s15, %s22
      %p97 = scmp.eq.s32.totalorder %s96, 0
      %s99 = sadd.s32 %s98, 1
      %s100 = scalar_select %p97, %s98, %s99
      %p103 = pneg %p97
      %p104 = scmp.eq.s32.totalorder %s15, 3
      %p105 = por %p103, %p104
      %p106 = scmp.ne.s32.totalorder %s98, %s101
      %p107 = scmp.eq.s32.totalorder %s15, 0
      %p108 = por %p106, %p107
      %p109 = scmp.ne.s32.totalorder %s98, %s101
      %p110 = scmp.eq.s32.totalorder %s20, 3
      %p111 = por %p109, %p110
      %p112 = scmp.ne.s32.totalorder %s101, %s102
      %p113 = scmp.eq.s32.totalorder %s20, 0
      %p114 = por %p112, %p113
      %p115 = scmp.ne.s32.totalorder %s101, %s102
      %p116 = scmp.eq.s32.totalorder %s21, 3
      %p117 = por %p115, %p116
      %p119 = scmp.ne.s32.totalorder %s102, %s118
      %p120 = scmp.eq.s32.totalorder %s21, 0
      %p121 = por %p119, %p120
      %p122 = scmp.le.s32.totalorder 1, %s15
      %p123 = scmp.lt.s32.totalorder %s15, 5
      %p124 = pnand %p122, %p123
      %p125 = pneg %p124
      // Predicated region
      $region9: #{gin_forward.1} parent=5 // pred_check
        _
      $region10: #{gin_forward.1} parent=5 // pred_check_branch
        %127 = sbr.rel (%p124) target = $region12
      $region11: #{gin_forward.1} parent=5 // pred_region
        %s128 = ssub.s32 %s15, 1
        // Predicated region
        $region13: #{gin_forward.1} parent=11 // pred_check
          %p129 = pneg %p88
        $region14: #{gin_forward.1} parent=11 // pred_check_branch
          %131 = sbr.rel (%p129) target = $region16
        $region15: #{gin_forward.1} parent=11 // pred_region
          %133 = vsyncadd [#allocation5], 0
          %s134 = sshll.u32 %s2, 4
          %s135 = int_to_ptr.hbm [resolvable:$true] %s134
          %s136 = sshll.u32 [#allocation6], 4
          %s137 = int_to_ptr.vmem [resolvable:$true] %s136
          %142 = dma.hbm_to_vmem [thread:$0]  %s135, 4736, %s137, [#allocation5], 128, 128, 8
        $region16: #{gin_forward.1} parent=11 // pred_fallthru
          _
      $region12: #{gin_forward.1} parent=5 // pred_fallthru
        _
      %p143 = scmp.lt.s32.totalorder %s15, 4
      // Predicated region
      $region17: #{gin_forward.1} parent=5 // pred_check
        %p144 = pneg %p143
      $region18: #{gin_forward.1} parent=5 // pred_check_branch
        %146 = sbr.rel (%p144) target = $region20
      $region19: #{gin_forward.1} parent=5 // pred_region
        // Predicated region
        $region21: #{gin_forward.1} parent=19 // pred_check
          %p147 = pneg %p35
        $region22: #{gin_forward.1} parent=19 // pred_check_branch
          %149 = sbr.rel (%p147) target = $region24
        $region23: #{gin_forward.1} parent=19 // pred_region
          %s150 = sand.u32 %s25, 1
          %s151 = scalar_lea.sflag [#allocation3], %s150
          %s152 = sand.u32 %s25, 1
          %s153 = smul.addr %s152, 128
          %s154 = scalar_lea.vmem [#allocation2], %s153
          %156 = vsyncadd %s151, 0
          %s157 = smul.addr %s15, 16
          %s158 = smul.addr %s157, 8
          %s159 = scalar_lea.hbm %s0, %s158
          %s160 = sshll.u32 %s159, 4
          %s161 = int_to_ptr.hbm [resolvable:$true] %s160
          %s162 = sshll.u32 %s154, 4
          %s163 = int_to_ptr.vmem [resolvable:$true] %s162
          %168 = dma.hbm_to_vmem [thread:$0]  %s161, 2048, %s163, %s151, 128, 128, 8
        $region24: #{gin_forward.1} parent=19 // pred_fallthru
          _
        // Predicated region
        $region25: #{gin_forward.1} parent=19 // pred_check
          %p169 = pneg %p61
        $region26: #{gin_forward.1} parent=19 // pred_check_branch
          %171 = sbr.rel (%p169) target = $region28
        $region27: #{gin_forward.1} parent=19 // pred_region
          %s172 = sand.u32 %s15, 1
          %s173 = scalar_lea.sflag [#allocation5], %s172
          %s174 = sand.u32 %s51, 1
          %s175 = smul.addr %s174, 128
          %s176 = scalar_lea.vmem [#allocation4], %s175
          %178 = vsyncadd %s173, 0
          %s179 = smul.addr %s15, 16
          %s180 = smul.addr %s179, 8
          %s181 = scalar_lea.hbm %s1, %s180
          %s182 = sshll.u32 %s181, 4
          %s183 = int_to_ptr.hbm [resolvable:$true] %s182
          %s184 = sshll.u32 %s176, 4
          %s185 = int_to_ptr.vmem [resolvable:$true] %s184
          %190 = dma.hbm_to_vmem [thread:$0]  %s183, 2048, %s185, %s173, 128, 128, 8
        $region28: #{gin_forward.1} parent=19 // pred_fallthru
          _
      $region20: #{gin_forward.1} parent=5 // pred_fallthru
        _
      %p191 = scmp.le.s32.totalorder 1, %s15
      %p192 = scmp.lt.s32.totalorder %s15, 5
      %p193 = pnand %p191, %p192
      %p194 = pneg %p193
      // Predicated region
      $region29: #{gin_forward.1} parent=5 // pred_check
        _
      $region30: #{gin_forward.1} parent=5 // pred_check_branch
        %196 = sbr.rel (%p193) target = $region32
      $region31: #{gin_forward.1} parent=5 // pred_region
        %s197 = ssub.s32 %s15, 1
        %s198 = sand.u32 %s28, 1
        %s199 = scalar_lea.sflag [#allocation3], %s198
        %s200 = sand.u32 %s28, 1
        %s201 = smul.addr %s200, 128
        %s202 = scalar_lea.vmem [#allocation2], %s201
        // Predicated region
        $region33: #{gin_forward.1} parent=31 // pred_check
          %p203 = pneg %p41
        $region34: #{gin_forward.1} parent=31 // pred_check_branch
          %205 = sbr.rel (%p203) target = $region36
        $region35: #{gin_forward.1} parent=31 // pred_region
          %207 = dma.done %s199, 2048
        $region36: #{gin_forward.1} parent=31 // pred_fallthru
          _
        %s208 = sand.u32 %s20, 1
        %s209 = scalar_lea.sflag [#allocation5], %s208
        %s210 = sand.u32 %s54, 1
        %s211 = smul.addr %s210, 128
        %s212 = scalar_lea.vmem [#allocation4], %s211
        // Predicated region
        $region37: #{gin_forward.1} parent=31 // pred_check
          %p213 = pneg %p67
        $region38: #{gin_forward.1} parent=31 // pred_check_branch
          %215 = sbr.rel (%p213) target = $region40
        $region39: #{gin_forward.1} parent=31 // pred_region
          %217 = dma.done %s209, 2048
        $region40: #{gin_forward.1} parent=31 // pred_fallthru
          _
        // Predicated region
        $region41: #{gin_forward.1} parent=31 // pred_check
          %p218 = pneg %p88
        $region42: #{gin_forward.1} parent=31 // pred_check_branch
          %220 = sbr.rel (%p218) target = $region44
        $region43: #{gin_forward.1} parent=31 // pred_region
          %222 = dma.done [#allocation5], 4736
        $region44: #{gin_forward.1} parent=31 // pred_fallthru
          _
        %s223 = sand.u32 %s28, 1
        %s224 = scalar_lea.sflag [#allocation3], %s223
        %s225 = sand.u32 %s28, 1
        %s226 = smul.addr %s225, 128
        %s227 = scalar_lea.vmem [#allocation2], %s226
        %p228 = pneg %p41
        %p229 = pneg %p38
        %s230 = sand.u32 %s20, 1
        %s231 = scalar_lea.sflag [#allocation5], %s230
        %s232 = sand.u32 %s54, 1
        %s233 = smul.addr %s232, 128
        %s234 = scalar_lea.vmem [#allocation4], %s233
        %p235 = pneg %p67
        %p236 = pneg %p64
        %p237 = pneg %p88
        %p238 = pneg %p85
        %p239 = pneg %p114
        %p240 = pneg %p111
        %p241 = scmp.lt.s32.totalorder %s20, 3
        %s242 = scalar_select %p241, %s20, 3
        %s243 = smul.addr %s242, 16
        %s244 = smul.addr %s243, 8
        %s245 = scalar_lea.vmem %s3, %s244
        %p246 = scmp.lt.s32.totalorder %s20, 3
        %s247 = scalar_select %p246, %s20, 3
        %s248 = smul.addr %s247, 16
        %s249 = smul.addr %s248, 8
        %s250 = scalar_lea.vmem %s3, %s249
        %v251 = vld [vmem:[%s202] sm:$0xff]
        %v252 = vld [vmem:[%s202 + $0x8] sm:$0xff]
        %v253 = vld [vmem:[%s202 + $0x10] sm:$0xff]
        %v254 = vld [vmem:[%s202 + $0x18] sm:$0xff]
        %v255 = vld [vmem:[%s202 + $0x20] sm:$0xff]
        %v256 = vld [vmem:[%s202 + $0x28] sm:$0xff]
        %v257 = vld [vmem:[%s202 + $0x30] sm:$0xff]
        %v258 = vld [vmem:[%s202 + $0x38] sm:$0xff]
        %v259 = vld [vmem:[%s202 + $0x40] sm:$0xff]
        %v260 = vld [vmem:[%s202 + $0x48] sm:$0xff]
        %v261 = vld [vmem:[%s202 + $0x50] sm:$0xff]
        %v262 = vld [vmem:[%s202 + $0x58] sm:$0xff]
        %v263 = vld [vmem:[%s202 + $0x60] sm:$0xff]
        %v264 = vld [vmem:[%s202 + $0x68] sm:$0xff]
        %v265 = vld [vmem:[%s202 + $0x70] sm:$0xff]
        %v266 = vld [vmem:[%s202 + $0x78] sm:$0xff]
        %v267 = vld [vmem:[%s212] sm:$0xff]
        %v268 = vld [vmem:[%s212 + $0x8] sm:$0xff]
        %v269 = vld [vmem:[%s212 + $0x10] sm:$0xff]
        %v270 = vld [vmem:[%s212 + $0x18] sm:$0xff]
        %v271 = vld [vmem:[%s212 + $0x20] sm:$0xff]
        %v272 = vld [vmem:[%s212 + $0x28] sm:$0xff]
        %v273 = vld [vmem:[%s212 + $0x30] sm:$0xff]
        %v274 = vld [vmem:[%s212 + $0x38] sm:$0xff]
        %v275 = vld [vmem:[%s212 + $0x40] sm:$0xff]
        %v276 = vld [vmem:[%s212 + $0x48] sm:$0xff]
        %v277 = vld [vmem:[%s212 + $0x50] sm:$0xff]
        %v278 = vld [vmem:[%s212 + $0x58] sm:$0xff]
        %v279 = vld [vmem:[%s212 + $0x60] sm:$0xff]
        %v280 = vld [vmem:[%s212 + $0x68] sm:$0xff]
        %v281 = vld [vmem:[%s212 + $0x70] sm:$0xff]
        %v282 = vld [vmem:[%s212 + $0x78] sm:$0xff]
        %v283 = vld [vmem:[#allocation6 + $0xa8] sm:$0xff]
        %v284 = vld [vmem:[#allocation6 + $0xb0] sm:$0xff]
        %v285 = vld [vmem:[#allocation6 + $0xb8] sm:$0xff]
        %v286 = vld [vmem:[#allocation6 + $0xc0] sm:$0xff]
        %v287 = vld [vmem:[#allocation6 + $0xc8] sm:$0xff]
        %v288 = vld [vmem:[#allocation6 + $0xd0] sm:$0xff]
        %v289 = vld [vmem:[#allocation6 + $0xd8] sm:$0xff]
        %v290 = vld [vmem:[#allocation6 + $0xe0] sm:$0xff]
        %v291 = vld [vmem:[#allocation6 + $0xe8] sm:$0xff]
        %v292 = vld [vmem:[#allocation6 + $0xf0] sm:$0xff]
        %v293 = vld [vmem:[#allocation6 + $0xf8] sm:$0xff]
        %v294 = vld [vmem:[#allocation6 + $0x100] sm:$0xff]
        %v295 = vld [vmem:[#allocation6 + $0x108] sm:$0xff]
        %v296 = vld [vmem:[#allocation6 + $0x110] sm:$0xff]
        %v297 = vld [vmem:[#allocation6 + $0x118] sm:$0xff]
        %v298 = vld [vmem:[#allocation6 + $0x120] sm:$0xff]
        %v299 = vld [vmem:[#allocation6] sm:$0xff]
        %v300 = vld [vmem:[#allocation6 + $0x8] sm:$0xff]
        %v301 = vld [vmem:[#allocation6 + $0x10] sm:$0xff]
        %v302 = vld [vmem:[#allocation6 + $0x18] sm:$0xff]
        %v303 = vld [vmem:[#allocation6 + $0x20] sm:$0xff]
        %v304 = vld [vmem:[#allocation6 + $0x28] sm:$0xff]
        %v305 = vld [vmem:[#allocation6 + $0x30] sm:$0xff]
        %v306 = vld [vmem:[#allocation6 + $0x38] sm:$0xff]
        %v307 = vld [vmem:[#allocation6 + $0xa0] sm:$0x1]
        %v308 = vld [vmem:[#allocation6 + $0xa1] sm:$0x1]
        %v309 = vld [vmem:[#allocation6 + $0xa2] sm:$0x1]
        %310 = vmatpush.msra.mxu0 %v282
        %311 = vmatpush.msra.mxu0 %v281
        %312 = vmatpush.msra.mxu0 %v280
        %313 = vmatpush.msra.mxu0 %v279
        %314 = vmatpush.msra.mxu0 %v278
        %315 = vmatpush.msra.mxu0 %v277
        %316 = vmatpush.msra.mxu0 %v276
        %317 = vmatpush.msra.mxu0 %v275
        %318 = vmatpush.msra.mxu0 %v274
        %319 = vmatpush.msra.mxu0 %v273
        %320 = vmatpush.msra.mxu0 %v272
        %321 = vmatpush.msra.mxu0 %v271
        %322 = vmatpush.msra.mxu0 %v270
        %323 = vmatpush.msra.mxu0 %v269
        %324 = vmatpush.msra.mxu0 %v268
        %325 = vmatpush.msra.mxu0 %v267
        %326 = vmatmul.f32.gmra.mxu0 %v251
        %v327 = vpop.f32.mrf.mxu0
        %v328 = vadd.f32 0.0, %v327
        %329 = vmatmul.f32.gmra.mxu0 %v252
        %v330 = vpop.f32.mrf.mxu0
        %v331 = vadd.f32 0.0, %v330
        %332 = vmatmul.f32.gmra.mxu0 %v253
        %v333 = vpop.f32.mrf.mxu0
        %v334 = vadd.f32 0.0, %v333
        %335 = vmatmul.f32.gmra.mxu0 %v254
        %v336 = vpop.f32.mrf.mxu0
        %v337 = vadd.f32 0.0, %v336
        %338 = vmatmul.f32.gmra.mxu0 %v255
        %v339 = vpop.f32.mrf.mxu0
        %v340 = vadd.f32 0.0, %v339
        %341 = vmatmul.f32.gmra.mxu0 %v256
        %v342 = vpop.f32.mrf.mxu0
        %v343 = vadd.f32 0.0, %v342
        %344 = vmatmul.f32.gmra.mxu0 %v257
        %v345 = vpop.f32.mrf.mxu0
        %v346 = vadd.f32 0.0, %v345
        %347 = vmatmul.f32.gmra.mxu0 %v258
        %v348 = vpop.f32.mrf.mxu0
        %v349 = vadd.f32 0.0, %v348
        %350 = vmatmul.f32.gmra.mxu0 %v259
        %v351 = vpop.f32.mrf.mxu0
        %v352 = vadd.f32 0.0, %v351
        %353 = vmatmul.f32.gmra.mxu0 %v260
        %v354 = vpop.f32.mrf.mxu0
        %v355 = vadd.f32 0.0, %v354
        %356 = vmatmul.f32.gmra.mxu0 %v261
        %v357 = vpop.f32.mrf.mxu0
        %v358 = vadd.f32 0.0, %v357
        %359 = vmatmul.f32.gmra.mxu0 %v262
        %v360 = vpop.f32.mrf.mxu0
        %v361 = vadd.f32 0.0, %v360
        %362 = vmatmul.f32.gmra.mxu0 %v263
        %v363 = vpop.f32.mrf.mxu0
        %v364 = vadd.f32 0.0, %v363
        %365 = vmatmul.f32.gmra.mxu0 %v264
        %v366 = vpop.f32.mrf.mxu0
        %v367 = vadd.f32 0.0, %v366
        %368 = vmatmul.f32.gmra.mxu0 %v265
        %v369 = vpop.f32.mrf.mxu0
        %v370 = vadd.f32 0.0, %v369
        %371 = vmatmul.f32.gmra.mxu0 %v266
        %v372 = vpop.f32.mrf.mxu0
        %v373 = vadd.f32 0.0, %v372
        %374 = vdwg.mxu0
        %v375 = vperm.slane %v307, 0
        %vm376 = vcmask 261120
        %v378 = vsel %vm376, %v328, 0
        %v381 = vsel %vm376, %v331, 0
        %v384 = vsel %vm376, %v334, 0
        %v387 = vsel %vm376, %v337, 0
        %v390 = vsel %vm376, %v340, 0
        %v393 = vsel %vm376, %v343, 0
        %v396 = vsel %vm376, %v346, 0
        %v399 = vsel %vm376, %v349, 0
        %v402 = vsel %vm376, %v352, 0
        %v405 = vsel %vm376, %v355, 0
        %v408 = vsel %vm376, %v358, 0
        %v411 = vsel %vm376, %v361, 0
        %v414 = vsel %vm376, %v364, 0
        %v417 = vsel %vm376, %v367, 0
        %v420 = vsel %vm376, %v370, 0
        %v423 = vsel %vm376, %v373, 0
        %425 = vmatpush.msra.mxu0 0.0
        %426 = vmatpush.msra.mxu0 0.0
        %427 = vmatpush.msra.mxu0 0.0
        %428 = vmatpush.msra.mxu0 0.0
        %429 = vmatpush.msra.mxu0 0.0
        %430 = vmatpush.msra.mxu0 0.0
        %431 = vmatpush.msra.mxu0 0.0
        %432 = vmatpush.msra.mxu0 0.0
        %433 = vmatpush.msra.mxu0 0.0
        %434 = vmatpush.msra.mxu0 0.0
        %435 = vmatpush.msra.mxu0 0.0
        %436 = vmatpush.msra.mxu0 0.0
        %437 = vmatpush.msra.mxu0 %v302
        %438 = vmatpush.msra.mxu0 %v301
        %439 = vmatpush.msra.mxu0 %v300
        %440 = vmatpush.msra.mxu0 %v299
        %441 = vmatmul.f32.gmra.mxu0 %v378
        %v442 = vpop.f32.mrf.mxu0
        %v443 = vadd.f32 %v375, %v442
        %444 = vmatmul.f32.gmra.mxu0 %v381
        %v445 = vpop.f32.mrf.mxu0
        %v446 = vadd.f32 %v375, %v445
        %447 = vmatmul.f32.gmra.mxu0 %v384
        %v448 = vpop.f32.mrf.mxu0
        %v449 = vadd.f32 %v375, %v448
        %450 = vmatmul.f32.gmra.mxu0 %v387
        %v451 = vpop.f32.mrf.mxu0
        %v452 = vadd.f32 %v375, %v451
        %453 = vmatmul.f32.gmra.mxu0 %v390
        %v454 = vpop.f32.mrf.mxu0
        %v455 = vadd.f32 %v375, %v454
        %456 = vmatmul.f32.gmra.mxu0 %v393
        %v457 = vpop.f32.mrf.mxu0
        %v458 = vadd.f32 %v375, %v457
        %459 = vmatmul.f32.gmra.mxu0 %v396
        %v460 = vpop.f32.mrf.mxu0
        %v461 = vadd.f32 %v375, %v460
        %462 = vmatmul.f32.gmra.mxu0 %v399
        %v463 = vpop.f32.mrf.mxu0
        %v464 = vadd.f32 %v375, %v463
        %465 = vmatmul.f32.gmra.mxu0 %v402
        %v466 = vpop.f32.mrf.mxu0
        %v467 = vadd.f32 %v375, %v466
        %468 = vmatmul.f32.gmra.mxu0 %v405
        %v469 = vpop.f32.mrf.mxu0
        %v470 = vadd.f32 %v375, %v469
        %471 = vmatmul.f32.gmra.mxu0 %v408
        %v472 = vpop.f32.mrf.mxu0
        %v473 = vadd.f32 %v375, %v472
        %474 = vmatmul.f32.gmra.mxu0 %v411
        %v475 = vpop.f32.mrf.mxu0
        %v476 = vadd.f32 %v375, %v475
        %477 = vmatmul.f32.gmra.mxu0 %v414
        %v478 = vpop.f32.mrf.mxu0
        %v479 = vadd.f32 %v375, %v478
        %480 = vmatmul.f32.gmra.mxu0 %v417
        %v481 = vpop.f32.mrf.mxu0
        %v482 = vadd.f32 %v375, %v481
        %483 = vmatmul.f32.gmra.mxu0 %v420
        %v484 = vpop.f32.mrf.mxu0
        %v485 = vadd.f32 %v375, %v484
        %486 = vmatmul.f32.gmra.mxu0 %v423
        %v487 = vpop.f32.mrf.mxu0
        %v488 = vadd.f32 %v375, %v487
        %489 = vdwg.mxu0
        %v490 = vmax.f32 %v443, 0.0
        %v491 = vmax.f32 %v446, 0.0
        %v492 = vmax.f32 %v449, 0.0
        %v493 = vmax.f32 %v452, 0.0
        %v494 = vmax.f32 %v455, 0.0
        %v495 = vmax.f32 %v458, 0.0
        %v496 = vmax.f32 %v461, 0.0
        %v497 = vmax.f32 %v464, 0.0
        %v498 = vmax.f32 %v467, 0.0
        %v499 = vmax.f32 %v470, 0.0
        %v500 = vmax.f32 %v473, 0.0
        %v501 = vmax.f32 %v476, 0.0
        %v502 = vmax.f32 %v479, 0.0
        %v503 = vmax.f32 %v482, 0.0
        %v504 = vmax.f32 %v485, 0.0
        %v505 = vmax.f32 %v488, 0.0
        %v507 = vsel %vm376, %v490, 0
        %v510 = vsel %vm376, %v491, 0
        %v513 = vsel %vm376, %v492, 0
        %v516 = vsel %vm376, %v493, 0
        %v519 = vsel %vm376, %v494, 0
        %v522 = vsel %vm376, %v495, 0
        %v525 = vsel %vm376, %v496, 0
        %v528 = vsel %vm376, %v497, 0
        %v531 = vsel %vm376, %v498, 0
        %v534 = vsel %vm376, %v499, 0
        %v537 = vsel %vm376, %v500, 0
        %v540 = vsel %vm376, %v501, 0
        %v543 = vsel %vm376, %v502, 0
        %v546 = vsel %vm376, %v503, 0
        %v549 = vsel %vm376, %v504, 0
        %v552 = vsel %vm376, %v505, 0
        %554 = vmatpush.msra.mxu0 0.0
        %555 = vmatpush.msra.mxu0 0.0
        %556 = vmatpush.msra.mxu0 0.0
        %557 = vmatpush.msra.mxu0 0.0
        %558 = vmatpush.msra.mxu0 0.0
        %559 = vmatpush.msra.mxu0 0.0
        %560 = vmatpush.msra.mxu0 0.0
        %561 = vmatpush.msra.mxu0 0.0
        %562 = vmatpush.msra.mxu0 0.0
        %563 = vmatpush.msra.mxu0 0.0
        %564 = vmatpush.msra.mxu0 0.0
        %565 = vmatpush.msra.mxu0 0.0
        %566 = vmatpush.msra.mxu0 %v306
        %567 = vmatpush.msra.mxu0 %v305
        %568 = vmatpush.msra.mxu0 %v304
        %569 = vmatpush.msra.mxu0 %v303
        %570 = vmatmul.f32.gmra.mxu0 %v507
        %v571 = vpop.f32.mrf.mxu0
        %v572 = vadd.f32 0.0, %v571
        %573 = vmatmul.f32.gmra.mxu0 %v510
        %v574 = vpop.f32.mrf.mxu0
        %v575 = vadd.f32 0.0, %v574
        %576 = vmatmul.f32.gmra.mxu0 %v513
        %v577 = vpop.f32.mrf.mxu0
        %v578 = vadd.f32 0.0, %v577
        %579 = vmatmul.f32.gmra.mxu0 %v516
        %v580 = vpop.f32.mrf.mxu0
        %v581 = vadd.f32 0.0, %v580
        %582 = vmatmul.f32.gmra.mxu0 %v519
        %v583 = vpop.f32.mrf.mxu0
        %v584 = vadd.f32 0.0, %v583
        %585 = vmatmul.f32.gmra.mxu0 %v522
        %v586 = vpop.f32.mrf.mxu0
        %v587 = vadd.f32 0.0, %v586
        %588 = vmatmul.f32.gmra.mxu0 %v525
        %v589 = vpop.f32.mrf.mxu0
        %v590 = vadd.f32 0.0, %v589
        %591 = vmatmul.f32.gmra.mxu0 %v528
        %v592 = vpop.f32.mrf.mxu0
        %v593 = vadd.f32 0.0, %v592
        %594 = vmatmul.f32.gmra.mxu0 %v531
        %v595 = vpop.f32.mrf.mxu0
        %v596 = vadd.f32 0.0, %v595
        %597 = vmatmul.f32.gmra.mxu0 %v534
        %v598 = vpop.f32.mrf.mxu0
        %v599 = vadd.f32 0.0, %v598
        %600 = vmatmul.f32.gmra.mxu0 %v537
        %v601 = vpop.f32.mrf.mxu0
        %v602 = vadd.f32 0.0, %v601
        %603 = vmatmul.f32.gmra.mxu0 %v540
        %v604 = vpop.f32.mrf.mxu0
        %v605 = vadd.f32 0.0, %v604
        %606 = vmatmul.f32.gmra.mxu0 %v543
        %v607 = vpop.f32.mrf.mxu0
        %v608 = vadd.f32 0.0, %v607
        %609 = vmatmul.f32.gmra.mxu0 %v546
        %v610 = vpop.f32.mrf.mxu0
        %v611 = vadd.f32 0.0, %v610
        %612 = vmatmul.f32.gmra.mxu0 %v549
        %v613 = vpop.f32.mrf.mxu0
        %v614 = vadd.f32 0.0, %v613
        %615 = vmatmul.f32.gmra.mxu0 %v552
        %v616 = vpop.f32.mrf.mxu0
        %v617 = vadd.f32 0.0, %v616
        %618 = vdwg.mxu0
        %619 = vmatpush.msra.mxu0 %v617
        %620 = vmatpush.msra.mxu0 %v614
        %621 = vmatpush.msra.mxu0 %v611
        %622 = vmatpush.msra.mxu0 %v608
        %623 = vmatpush.msra.mxu0 %v605
        %624 = vmatpush.msra.mxu0 %v602
        %625 = vmatpush.msra.mxu0 %v599
        %626 = vmatpush.msra.mxu0 %v596
        %627 = vmatpush.msra.mxu0 %v593
        %628 = vmatpush.msra.mxu0 %v590
        %629 = vmatpush.msra.mxu0 %v587
        %630 = vmatpush.msra.mxu0 %v584
        %631 = vmatpush.msra.mxu0 %v581
        %632 = vmatpush.msra.mxu0 %v578
        %633 = vmatpush.msra.mxu0 %v575
        %634 = vmatpush.msra.mxu0 %v572
        %635 = vmatmul.f32.gmra.mxu0 %v283
        %v636 = vpop.f32.mrf.mxu0
        %v637 = vadd.f32 0.0, %v636
        %638 = vmatmul.f32.gmra.mxu0 %v284
        %v639 = vpop.f32.mrf.mxu0
        %v640 = vadd.f32 0.0, %v639
        %641 = vmatmul.f32.gmra.mxu0 %v285
        %v642 = vpop.f32.mrf.mxu0
        %v643 = vadd.f32 0.0, %v642
        %644 = vmatmul.f32.gmra.mxu0 %v286
        %v645 = vpop.f32.mrf.mxu0
        %v646 = vadd.f32 0.0, %v645
        %647 = vmatmul.f32.gmra.mxu0 %v287
        %v648 = vpop.f32.mrf.mxu0
        %v649 = vadd.f32 0.0, %v648
        %650 = vmatmul.f32.gmra.mxu0 %v288
        %v651 = vpop.f32.mrf.mxu0
        %v652 = vadd.f32 0.0, %v651
        %653 = vmatmul.f32.gmra.mxu0 %v289
        %v654 = vpop.f32.mrf.mxu0
        %v655 = vadd.f32 0.0, %v654
        %656 = vmatmul.f32.gmra.mxu0 %v290
        %v657 = vpop.f32.mrf.mxu0
        %v658 = vadd.f32 0.0, %v657
        %659 = vmatmul.f32.gmra.mxu0 %v291
        %v660 = vpop.f32.mrf.mxu0
        %v661 = vadd.f32 0.0, %v660
        %662 = vmatmul.f32.gmra.mxu0 %v292
        %v663 = vpop.f32.mrf.mxu0
        %v664 = vadd.f32 0.0, %v663
        %665 = vmatmul.f32.gmra.mxu0 %v293
        %v666 = vpop.f32.mrf.mxu0
        %v667 = vadd.f32 0.0, %v666
        %668 = vmatmul.f32.gmra.mxu0 %v294
        %v669 = vpop.f32.mrf.mxu0
        %v670 = vadd.f32 0.0, %v669
        %671 = vmatmul.f32.gmra.mxu0 %v295
        %v672 = vpop.f32.mrf.mxu0
        %v673 = vadd.f32 0.0, %v672
        %674 = vmatmul.f32.gmra.mxu0 %v296
        %v675 = vpop.f32.mrf.mxu0
        %v676 = vadd.f32 0.0, %v675
        %677 = vmatmul.f32.gmra.mxu0 %v297
        %v678 = vpop.f32.mrf.mxu0
        %v679 = vadd.f32 0.0, %v678
        %680 = vmatmul.f32.gmra.mxu0 %v298
        %v681 = vpop.f32.mrf.mxu0
        %v682 = vadd.f32 0.0, %v681
        %683 = vdwg.mxu0
        %v684 = vmul.f32 %v572, %v572
        %v685 = vmul.f32 %v575, %v575
        %v686 = vmul.f32 %v578, %v578
        %v687 = vmul.f32 %v581, %v581
        %v688 = vmul.f32 %v584, %v584
        %v689 = vmul.f32 %v587, %v587
        %v690 = vmul.f32 %v590, %v590
        %v691 = vmul.f32 %v593, %v593
        %v692 = vmul.f32 %v596, %v596
        %v693 = vmul.f32 %v599, %v599
        %v694 = vmul.f32 %v602, %v602
        %v695 = vmul.f32 %v605, %v605
        %v696 = vmul.f32 %v608, %v608
        %v697 = vmul.f32 %v611, %v611
        %v698 = vmul.f32 %v614, %v614
        %v699 = vmul.f32 %v617, %v617
        %700 = vmatpush.msra.mxu0 %v699
        %701 = vmatpush.msra.mxu0 %v698
        %702 = vmatpush.msra.mxu0 %v697
        %703 = vmatpush.msra.mxu0 %v696
        %704 = vmatpush.msra.mxu0 %v695
        %705 = vmatpush.msra.mxu0 %v694
        %706 = vmatpush.msra.mxu0 %v693
        %707 = vmatpush.msra.mxu0 %v692
        %708 = vmatpush.msra.mxu0 %v691
        %709 = vmatpush.msra.mxu0 %v690
        %710 = vmatpush.msra.mxu0 %v689
        %711 = vmatpush.msra.mxu0 %v688
        %712 = vmatpush.msra.mxu0 %v687
        %713 = vmatpush.msra.mxu0 %v686
        %714 = vmatpush.msra.mxu0 %v685
        %715 = vmatpush.msra.mxu0 %v684
        %716 = vmatmul.f32.gmra.mxu0 %v283
        %v717 = vpop.f32.mrf.mxu0
        %v718 = vadd.f32 0.0, %v717
        %719 = vmatmul.f32.gmra.mxu0 %v284
        %v720 = vpop.f32.mrf.mxu0
        %v721 = vadd.f32 0.0, %v720
        %722 = vmatmul.f32.gmra.mxu0 %v285
        %v723 = vpop.f32.mrf.mxu0
        %v724 = vadd.f32 0.0, %v723
        %725 = vmatmul.f32.gmra.mxu0 %v286
        %v726 = vpop.f32.mrf.mxu0
        %v727 = vadd.f32 0.0, %v726
        %728 = vmatmul.f32.gmra.mxu0 %v287
        %v729 = vpop.f32.mrf.mxu0
        %v730 = vadd.f32 0.0, %v729
        %731 = vmatmul.f32.gmra.mxu0 %v288
        %v732 = vpop.f32.mrf.mxu0
        %v733 = vadd.f32 0.0, %v732
        %734 = vmatmul.f32.gmra.mxu0 %v289
        %v735 = vpop.f32.mrf.mxu0
        %v736 = vadd.f32 0.0, %v735
        %737 = vmatmul.f32.gmra.mxu0 %v290
        %v738 = vpop.f32.mrf.mxu0
        %v739 = vadd.f32 0.0, %v738
        %740 = vmatmul.f32.gmra.mxu0 %v291
        %v741 = vpop.f32.mrf.mxu0
        %v742 = vadd.f32 0.0, %v741
        %743 = vmatmul.f32.gmra.mxu0 %v292
        %v744 = vpop.f32.mrf.mxu0
        %v745 = vadd.f32 0.0, %v744
        %746 = vmatmul.f32.gmra.mxu0 %v293
        %v747 = vpop.f32.mrf.mxu0
        %v748 = vadd.f32 0.0, %v747
        %749 = vmatmul.f32.gmra.mxu0 %v294
        %v750 = vpop.f32.mrf.mxu0
        %v751 = vadd.f32 0.0, %v750
        %752 = vmatmul.f32.gmra.mxu0 %v295
        %v753 = vpop.f32.mrf.mxu0
        %v754 = vadd.f32 0.0, %v753
        %755 = vmatmul.f32.gmra.mxu0 %v296
        %v756 = vpop.f32.mrf.mxu0
        %v757 = vadd.f32 0.0, %v756
        %758 = vmatmul.f32.gmra.mxu0 %v297
        %v759 = vpop.f32.mrf.mxu0
        %v760 = vadd.f32 0.0, %v759
        %761 = vmatmul.f32.gmra.mxu0 %v298
        %v762 = vpop.f32.mrf.mxu0
        %v763 = vadd.f32 0.0, %v762
        %764 = vdwg.mxu0
        %v765 = vmul.f32 %v637, %v637
        %v766 = vmul.f32 %v640, %v640
        %v767 = vmul.f32 %v643, %v643
        %v768 = vmul.f32 %v646, %v646
        %v769 = vmul.f32 %v649, %v649
        %v770 = vmul.f32 %v652, %v652
        %v771 = vmul.f32 %v655, %v655
        %v772 = vmul.f32 %v658, %v658
        %v773 = vmul.f32 %v661, %v661
        %v774 = vmul.f32 %v664, %v664
        %v775 = vmul.f32 %v667, %v667
        %v776 = vmul.f32 %v670, %v670
        %v777 = vmul.f32 %v673, %v673
        %v778 = vmul.f32 %v676, %v676
        %v779 = vmul.f32 %v679, %v679
        %v780 = vmul.f32 %v682, %v682
        %v781 = vsub.f32 %v718, %v765
        %v782 = vsub.f32 %v721, %v766
        %v783 = vsub.f32 %v724, %v767
        %v784 = vsub.f32 %v727, %v768
        %v785 = vsub.f32 %v730, %v769
        %v786 = vsub.f32 %v733, %v770
        %v787 = vsub.f32 %v736, %v771
        %v788 = vsub.f32 %v739, %v772
        %v789 = vsub.f32 %v742, %v773
        %v790 = vsub.f32 %v745, %v774
        %v791 = vsub.f32 %v748, %v775
        %v792 = vsub.f32 %v751, %v776
        %v793 = vsub.f32 %v754, %v777
        %v794 = vsub.f32 %v757, %v778
        %v795 = vsub.f32 %v760, %v779
        %v796 = vsub.f32 %v763, %v780
        %v797 = vadd.f32 %v781, 1e-05
        %v798 = vadd.f32 %v782, 1e-05
        %v799 = vadd.f32 %v783, 1e-05
        %v800 = vadd.f32 %v784, 1e-05
        %v801 = vadd.f32 %v785, 1e-05
        %v802 = vadd.f32 %v786, 1e-05
        %v803 = vadd.f32 %v787, 1e-05
        %v804 = vadd.f32 %v788, 1e-05
        %v805 = vadd.f32 %v789, 1e-05
        %v806 = vadd.f32 %v790, 1e-05
        %v807 = vadd.f32 %v791, 1e-05
        %v808 = vadd.f32 %v792, 1e-05
        %v809 = vadd.f32 %v793, 1e-05
        %v810 = vadd.f32 %v794, 1e-05
        %v811 = vadd.f32 %v795, 1e-05
        %v812 = vadd.f32 %v796, 1e-05
        %v813 = vrsqrt.pop %v797
        %v814 = vmul.f32 %v813, %v797
        %v815 = vmul.f32 %v814, %v813
        %v816 = vmul.f32 0.5, %v815
        %v817 = vsub.f32 1.5, %v816
        %v818 = vmul.f32 %v813, %v817
        %vm819 = vweird.f32 %v797
        %vm820 = vweird.f32 %v813
        %vm821 = vmor %vm819, %vm820
        %v822 = vsel %vm821, %v813, %v818
        %v823 = vrsqrt.pop %v798
        %v824 = vmul.f32 %v823, %v798
        %v825 = vmul.f32 %v824, %v823
        %v826 = vmul.f32 0.5, %v825
        %v827 = vsub.f32 1.5, %v826
        %v828 = vmul.f32 %v823, %v827
        %vm829 = vweird.f32 %v798
        %vm830 = vweird.f32 %v823
        %vm831 = vmor %vm829, %vm830
        %v832 = vsel %vm831, %v823, %v828
        %v833 = vrsqrt.pop %v799
        %v834 = vmul.f32 %v833, %v799
        %v835 = vmul.f32 %v834, %v833
        %v836 = vmul.f32 0.5, %v835
        %v837 = vsub.f32 1.5, %v836
        %v838 = vmul.f32 %v833, %v837
        %vm839 = vweird.f32 %v799
        %vm840 = vweird.f32 %v833
        %vm841 = vmor %vm839, %vm840
        %v842 = vsel %vm841, %v833, %v838
        %v843 = vrsqrt.pop %v800
        %v844 = vmul.f32 %v843, %v800
        %v845 = vmul.f32 %v844, %v843
        %v846 = vmul.f32 0.5, %v845
        %v847 = vsub.f32 1.5, %v846
        %v848 = vmul.f32 %v843, %v847
        %vm849 = vweird.f32 %v800
        %vm850 = vweird.f32 %v843
        %vm851 = vmor %vm849, %vm850
        %v852 = vsel %vm851, %v843, %v848
        %v853 = vrsqrt.pop %v801
        %v854 = vmul.f32 %v853, %v801
        %v855 = vmul.f32 %v854, %v853
        %v856 = vmul.f32 0.5, %v855
        %v857 = vsub.f32 1.5, %v856
        %v858 = vmul.f32 %v853, %v857
        %vm859 = vweird.f32 %v801
        %vm860 = vweird.f32 %v853
        %vm861 = vmor %vm859, %vm860
        %v862 = vsel %vm861, %v853, %v858
        %v863 = vrsqrt.pop %v802
        %v864 = vmul.f32 %v863, %v802
        %v865 = vmul.f32 %v864, %v863
        %v866 = vmul.f32 0.5, %v865
        %v867 = vsub.f32 1.5, %v866
        %v868 = vmul.f32 %v863, %v867
        %vm869 = vweird.f32 %v802
        %vm870 = vweird.f32 %v863
        %vm871 = vmor %vm869, %vm870
        %v872 = vsel %vm871, %v863, %v868
        %v873 = vrsqrt.pop %v803
        %v874 = vmul.f32 %v873, %v803
        %v875 = vmul.f32 %v874, %v873
        %v876 = vmul.f32 0.5, %v875
        %v877 = vsub.f32 1.5, %v876
        %v878 = vmul.f32 %v873, %v877
        %vm879 = vweird.f32 %v803
        %vm880 = vweird.f32 %v873
        %vm881 = vmor %vm879, %vm880
        %v882 = vsel %vm881, %v873, %v878
        %v883 = vrsqrt.pop %v804
        %v884 = vmul.f32 %v883, %v804
        %v885 = vmul.f32 %v884, %v883
        %v886 = vmul.f32 0.5, %v885
        %v887 = vsub.f32 1.5, %v886
        %v888 = vmul.f32 %v883, %v887
        %vm889 = vweird.f32 %v804
        %vm890 = vweird.f32 %v883
        %vm891 = vmor %vm889, %vm890
        %v892 = vsel %vm891, %v883, %v888
        %v893 = vrsqrt.pop %v805
        %v894 = vmul.f32 %v893, %v805
        %v895 = vmul.f32 %v894, %v893
        %v896 = vmul.f32 0.5, %v895
        %v897 = vsub.f32 1.5, %v896
        %v898 = vmul.f32 %v893, %v897
        %vm899 = vweird.f32 %v805
        %vm900 = vweird.f32 %v893
        %vm901 = vmor %vm899, %vm900
        %v902 = vsel %vm901, %v893, %v898
        %v903 = vrsqrt.pop %v806
        %v904 = vmul.f32 %v903, %v806
        %v905 = vmul.f32 %v904, %v903
        %v906 = vmul.f32 0.5, %v905
        %v907 = vsub.f32 1.5, %v906
        %v908 = vmul.f32 %v903, %v907
        %vm909 = vweird.f32 %v806
        %vm910 = vweird.f32 %v903
        %vm911 = vmor %vm909, %vm910
        %v912 = vsel %vm911, %v903, %v908
        %v913 = vrsqrt.pop %v807
        %v914 = vmul.f32 %v913, %v807
        %v915 = vmul.f32 %v914, %v913
        %v916 = vmul.f32 0.5, %v915
        %v917 = vsub.f32 1.5, %v916
        %v918 = vmul.f32 %v913, %v917
        %vm919 = vweird.f32 %v807
        %vm920 = vweird.f32 %v913
        %vm921 = vmor %vm919, %vm920
        %v922 = vsel %vm921, %v913, %v918
        %v923 = vrsqrt.pop %v808
        %v924 = vmul.f32 %v923, %v808
        %v925 = vmul.f32 %v924, %v923
        %v926 = vmul.f32 0.5, %v925
        %v927 = vsub.f32 1.5, %v926
        %v928 = vmul.f32 %v923, %v927
        %vm929 = vweird.f32 %v808
        %vm930 = vweird.f32 %v923
        %vm931 = vmor %vm929, %vm930
        %v932 = vsel %vm931, %v923, %v928
        %v933 = vrsqrt.pop %v809
        %v934 = vmul.f32 %v933, %v809
        %v935 = vmul.f32 %v934, %v933
        %v936 = vmul.f32 0.5, %v935
        %v937 = vsub.f32 1.5, %v936
        %v938 = vmul.f32 %v933, %v937
        %vm939 = vweird.f32 %v809
        %vm940 = vweird.f32 %v933
        %vm941 = vmor %vm939, %vm940
        %v942 = vsel %vm941, %v933, %v938
        %v943 = vrsqrt.pop %v810
        %v944 = vmul.f32 %v943, %v810
        %v945 = vmul.f32 %v944, %v943
        %v946 = vmul.f32 0.5, %v945
        %v947 = vsub.f32 1.5, %v946
        %v948 = vmul.f32 %v943, %v947
        %vm949 = vweird.f32 %v810
        %vm950 = vweird.f32 %v943
        %vm951 = vmor %vm949, %vm950
        %v952 = vsel %vm951, %v943, %v948
        %v953 = vrsqrt.pop %v811
        %v954 = vmul.f32 %v953, %v811
        %v955 = vmul.f32 %v954, %v953
        %v956 = vmul.f32 0.5, %v955
        %v957 = vsub.f32 1.5, %v956
        %v958 = vmul.f32 %v953, %v957
        %vm959 = vweird.f32 %v811
        %vm960 = vweird.f32 %v953
        %vm961 = vmor %vm959, %vm960
        %v962 = vsel %vm961, %v953, %v958
        %v963 = vrsqrt.pop %v812
        %v964 = vmul.f32 %v963, %v812
        %v965 = vmul.f32 %v964, %v963
        %v966 = vmul.f32 0.5, %v965
        %v967 = vsub.f32 1.5, %v966
        %v968 = vmul.f32 %v963, %v967
        %vm969 = vweird.f32 %v812
        %vm970 = vweird.f32 %v963
        %vm971 = vmor %vm969, %vm970
        %v972 = vsel %vm971, %v963, %v968
        %v973 = vperm.slane %v308, 0
        %v974 = vmul.f32 %v973, %v822
        %v975 = vmul.f32 %v973, %v832
        %v976 = vmul.f32 %v973, %v842
        %v977 = vmul.f32 %v973, %v852
        %v978 = vmul.f32 %v973, %v862
        %v979 = vmul.f32 %v973, %v872
        %v980 = vmul.f32 %v973, %v882
        %v981 = vmul.f32 %v973, %v892
        %v982 = vmul.f32 %v973, %v902
        %v983 = vmul.f32 %v973, %v912
        %v984 = vmul.f32 %v973, %v922
        %v985 = vmul.f32 %v973, %v932
        %v986 = vmul.f32 %v973, %v942
        %v987 = vmul.f32 %v973, %v952
        %v988 = vmul.f32 %v973, %v962
        %v989 = vmul.f32 %v973, %v972
        %v990 = vmul.f32 %v637, %v974
        %v991 = vmul.f32 %v640, %v975
        %v992 = vmul.f32 %v643, %v976
        %v993 = vmul.f32 %v646, %v977
        %v994 = vmul.f32 %v649, %v978
        %v995 = vmul.f32 %v652, %v979
        %v996 = vmul.f32 %v655, %v980
        %v997 = vmul.f32 %v658, %v981
        %v998 = vmul.f32 %v661, %v982
        %v999 = vmul.f32 %v664, %v983
        %v1000 = vmul.f32 %v667, %v984
        %v1001 = vmul.f32 %v670, %v985
        %v1002 = vmul.f32 %v673, %v986
        %v1003 = vmul.f32 %v676, %v987
        %v1004 = vmul.f32 %v679, %v988
        %v1005 = vmul.f32 %v682, %v989
        %v1006 = vperm.slane %v309, 0
        %v1007 = vsub.f32 %v1006, %v990
        %v1008 = vsub.f32 %v1006, %v991
        %v1009 = vsub.f32 %v1006, %v992
        %v1010 = vsub.f32 %v1006, %v993
        %v1011 = vsub.f32 %v1006, %v994
        %v1012 = vsub.f32 %v1006, %v995
        %v1013 = vsub.f32 %v1006, %v996
        %v1014 = vsub.f32 %v1006, %v997
        %v1015 = vsub.f32 %v1006, %v998
        %v1016 = vsub.f32 %v1006, %v999
        %v1017 = vsub.f32 %v1006, %v1000
        %v1018 = vsub.f32 %v1006, %v1001
        %v1019 = vsub.f32 %v1006, %v1002
        %v1020 = vsub.f32 %v1006, %v1003
        %v1021 = vsub.f32 %v1006, %v1004
        %v1022 = vsub.f32 %v1006, %v1005
        %v1023 = vmul.f32 %v572, %v974
        %v1024 = vmul.f32 %v575, %v975
        %v1025 = vmul.f32 %v578, %v976
        %v1026 = vmul.f32 %v581, %v977
        %v1027 = vmul.f32 %v584, %v978
        %v1028 = vmul.f32 %v587, %v979
        %v1029 = vmul.f32 %v590, %v980
        %v1030 = vmul.f32 %v593, %v981
        %v1031 = vmul.f32 %v596, %v982
        %v1032 = vmul.f32 %v599, %v983
        %v1033 = vmul.f32 %v602, %v984
        %v1034 = vmul.f32 %v605, %v985
        %v1035 = vmul.f32 %v608, %v986
        %v1036 = vmul.f32 %v611, %v987
        %v1037 = vmul.f32 %v614, %v988
        %v1038 = vmul.f32 %v617, %v989
        %v1039 = vadd.f32 %v1023, %v1007
        %v1040 = vadd.f32 %v1024, %v1008
        %v1041 = vadd.f32 %v1025, %v1009
        %v1042 = vadd.f32 %v1026, %v1010
        %v1043 = vadd.f32 %v1027, %v1011
        %v1044 = vadd.f32 %v1028, %v1012
        %v1045 = vadd.f32 %v1029, %v1013
        %v1046 = vadd.f32 %v1030, %v1014
        %v1047 = vadd.f32 %v1031, %v1015
        %v1048 = vadd.f32 %v1032, %v1016
        %v1049 = vadd.f32 %v1033, %v1017
        %v1050 = vadd.f32 %v1034, %v1018
        %v1051 = vadd.f32 %v1035, %v1019
        %v1052 = vadd.f32 %v1036, %v1020
        %v1053 = vadd.f32 %v1037, %v1021
        %v1054 = vadd.f32 %v1038, %v1022
        %v1055 = vmax.f32 %v1039, 0.0
        %v1056 = vmax.f32 %v1040, 0.0
        %v1057 = vmax.f32 %v1041, 0.0
        %v1058 = vmax.f32 %v1042, 0.0
        %v1059 = vmax.f32 %v1043, 0.0
        %v1060 = vmax.f32 %v1044, 0.0
        %v1061 = vmax.f32 %v1045, 0.0
        %v1062 = vmax.f32 %v1046, 0.0
        %v1063 = vmax.f32 %v1047, 0.0
        %v1064 = vmax.f32 %v1048, 0.0
        %v1065 = vmax.f32 %v1049, 0.0
        %v1066 = vmax.f32 %v1050, 0.0
        %v1067 = vmax.f32 %v1051, 0.0
        %v1068 = vmax.f32 %v1052, 0.0
        %v1069 = vmax.f32 %v1053, 0.0
        %v1070 = vmax.f32 %v1054, 0.0
        %v1071 = vld [vmem:[#allocation6 + $0x40] sm:$0xff]
        %v1072 = vld [vmem:[#allocation6 + $0x48] sm:$0xff]
        %v1073 = vld [vmem:[#allocation6 + $0x50] sm:$0xff]
        %v1074 = vld [vmem:[#allocation6 + $0x58] sm:$0xff]
        %v1075 = vld [vmem:[#allocation6 + $0x60] sm:$0xff]
        %v1076 = vld [vmem:[#allocation6 + $0x68] sm:$0xff]
        %v1077 = vld [vmem:[#allocation6 + $0x70] sm:$0xff]
        %v1078 = vld [vmem:[#allocation6 + $0x78] sm:$0xff]
        %v1079 = vld [vmem:[#allocation6 + $0xa3] sm:$0x1]
        %v1080 = vld [vmem:[#allocation6 + $0xa4] sm:$0x1]
        %v1081 = vld [vmem:[#allocation6 + $0xa5] sm:$0x1]
        %1082 = vmatpush.msra.mxu0 %v1070
        %1083 = vmatpush.msra.mxu0 %v1069
        %1084 = vmatpush.msra.mxu0 %v1068
        %1085 = vmatpush.msra.mxu0 %v1067
        %1086 = vmatpush.msra.mxu0 %v1066
        %1087 = vmatpush.msra.mxu0 %v1065
        %1088 = vmatpush.msra.mxu0 %v1064
        %1089 = vmatpush.msra.mxu0 %v1063
        %1090 = vmatpush.msra.mxu0 %v1062
        %1091 = vmatpush.msra.mxu0 %v1061
        %1092 = vmatpush.msra.mxu0 %v1060
        %1093 = vmatpush.msra.mxu0 %v1059
        %1094 = vmatpush.msra.mxu0 %v1058
        %1095 = vmatpush.msra.mxu0 %v1057
        %1096 = vmatpush.msra.mxu0 %v1056
        %1097 = vmatpush.msra.mxu0 %v1055
        %1098 = vmatmul.f32.gmra.mxu0 %v251
        %v1099 = vpop.f32.mrf.mxu0
        %v1100 = vadd.f32 0.0, %v1099
        %1101 = vmatmul.f32.gmra.mxu0 %v252
        %v1102 = vpop.f32.mrf.mxu0
        %v1103 = vadd.f32 0.0, %v1102
        %1104 = vmatmul.f32.gmra.mxu0 %v253
        %v1105 = vpop.f32.mrf.mxu0
        %v1106 = vadd.f32 0.0, %v1105
        %1107 = vmatmul.f32.gmra.mxu0 %v254
        %v1108 = vpop.f32.mrf.mxu0
        %v1109 = vadd.f32 0.0, %v1108
        %1110 = vmatmul.f32.gmra.mxu0 %v255
        %v1111 = vpop.f32.mrf.mxu0
        %v1112 = vadd.f32 0.0, %v1111
        %1113 = vmatmul.f32.gmra.mxu0 %v256
        %v1114 = vpop.f32.mrf.mxu0
        %v1115 = vadd.f32 0.0, %v1114
        %1116 = vmatmul.f32.gmra.mxu0 %v257
        %v1117 = vpop.f32.mrf.mxu0
        %v1118 = vadd.f32 0.0, %v1117
        %1119 = vmatmul.f32.gmra.mxu0 %v258
        %v1120 = vpop.f32.mrf.mxu0
        %v1121 = vadd.f32 0.0, %v1120
        %1122 = vmatmul.f32.gmra.mxu0 %v259
        %v1123 = vpop.f32.mrf.mxu0
        %v1124 = vadd.f32 0.0, %v1123
        %1125 = vmatmul.f32.gmra.mxu0 %v260
        %v1126 = vpop.f32.mrf.mxu0
        %v1127 = vadd.f32 0.0, %v1126
        %1128 = vmatmul.f32.gmra.mxu0 %v261
        %v1129 = vpop.f32.mrf.mxu0
        %v1130 = vadd.f32 0.0, %v1129
        %1131 = vmatmul.f32.gmra.mxu0 %v262
        %v1132 = vpop.f32.mrf.mxu0
        %v1133 = vadd.f32 0.0, %v1132
        %1134 = vmatmul.f32.gmra.mxu0 %v263
        %v1135 = vpop.f32.mrf.mxu0
        %v1136 = vadd.f32 0.0, %v1135
        %1137 = vmatmul.f32.gmra.mxu0 %v264
        %v1138 = vpop.f32.mrf.mxu0
        %v1139 = vadd.f32 0.0, %v1138
        %1140 = vmatmul.f32.gmra.mxu0 %v265
        %v1141 = vpop.f32.mrf.mxu0
        %v1142 = vadd.f32 0.0, %v1141
        %1143 = vmatmul.f32.gmra.mxu0 %v266
        %v1144 = vpop.f32.mrf.mxu0
        %v1145 = vadd.f32 0.0, %v1144
        %1146 = vdwg.mxu0
        %v1147 = vperm.slane %v1079, 0
        %v1149 = vsel %vm376, %v1100, 0
        %v1152 = vsel %vm376, %v1103, 0
        %v1155 = vsel %vm376, %v1106, 0
        %v1158 = vsel %vm376, %v1109, 0
        %v1161 = vsel %vm376, %v1112, 0
        %v1164 = vsel %vm376, %v1115, 0
        %v1167 = vsel %vm376, %v1118, 0
        %v1170 = vsel %vm376, %v1121, 0
        %v1173 = vsel %vm376, %v1124, 0
        %v1176 = vsel %vm376, %v1127, 0
        %v1179 = vsel %vm376, %v1130, 0
        %v1182 = vsel %vm376, %v1133, 0
        %v1185 = vsel %vm376, %v1136, 0
        %v1188 = vsel %vm376, %v1139, 0
        %v1191 = vsel %vm376, %v1142, 0
        %v1194 = vsel %vm376, %v1145, 0
        %1196 = vmatpush.msra.mxu0 0.0
        %1197 = vmatpush.msra.mxu0 0.0
        %1198 = vmatpush.msra.mxu0 0.0
        %1199 = vmatpush.msra.mxu0 0.0
        %1200 = vmatpush.msra.mxu0 0.0
        %1201 = vmatpush.msra.mxu0 0.0
        %1202 = vmatpush.msra.mxu0 0.0
        %1203 = vmatpush.msra.mxu0 0.0
        %1204 = vmatpush.msra.mxu0 0.0
        %1205 = vmatpush.msra.mxu0 0.0
        %1206 = vmatpush.msra.mxu0 0.0
        %1207 = vmatpush.msra.mxu0 0.0
        %1208 = vmatpush.msra.mxu0 %v1074
        %1209 = vmatpush.msra.mxu0 %v1073
        %1210 = vmatpush.msra.mxu0 %v1072
        %1211 = vmatpush.msra.mxu0 %v1071
        %1212 = vmatmul.f32.gmra.mxu0 %v1149
        %v1213 = vpop.f32.mrf.mxu0
        %v1214 = vadd.f32 %v1147, %v1213
        %1215 = vmatmul.f32.gmra.mxu0 %v1152
        %v1216 = vpop.f32.mrf.mxu0
        %v1217 = vadd.f32 %v1147, %v1216
        %1218 = vmatmul.f32.gmra.mxu0 %v1155
        %v1219 = vpop.f32.mrf.mxu0
        %v1220 = vadd.f32 %v1147, %v1219
        %1221 = vmatmul.f32.gmra.mxu0 %v1158
        %v1222 = vpop.f32.mrf.mxu0
        %v1223 = vadd.f32 %v1147, %v1222
        %1224 = vmatmul.f32.gmra.mxu0 %v1161
        %v1225 = vpop.f32.mrf.mxu0
        %v1226 = vadd.f32 %v1147, %v1225
        %1227 = vmatmul.f32.gmra.mxu0 %v1164
        %v1228 = vpop.f32.mrf.mxu0
        %v1229 = vadd.f32 %v1147, %v1228
        %1230 = vmatmul.f32.gmra.mxu0 %v1167
        %v1231 = vpop.f32.mrf.mxu0
        %v1232 = vadd.f32 %v1147, %v1231
        %1233 = vmatmul.f32.gmra.mxu0 %v1170
        %v1234 = vpop.f32.mrf.mxu0
        %v1235 = vadd.f32 %v1147, %v1234
        %1236 = vmatmul.f32.gmra.mxu0 %v1173
        %v1237 = vpop.f32.mrf.mxu0
        %v1238 = vadd.f32 %v1147, %v1237
        %1239 = vmatmul.f32.gmra.mxu0 %v1176
        %v1240 = vpop.f32.mrf.mxu0
        %v1241 = vadd.f32 %v1147, %v1240
        %1242 = vmatmul.f32.gmra.mxu0 %v1179
        %v1243 = vpop.f32.mrf.mxu0
        %v1244 = vadd.f32 %v1147, %v1243
        %1245 = vmatmul.f32.gmra.mxu0 %v1182
        %v1246 = vpop.f32.mrf.mxu0
        %v1247 = vadd.f32 %v1147, %v1246
        %1248 = vmatmul.f32.gmra.mxu0 %v1185
        %v1249 = vpop.f32.mrf.mxu0
        %v1250 = vadd.f32 %v1147, %v1249
        %1251 = vmatmul.f32.gmra.mxu0 %v1188
        %v1252 = vpop.f32.mrf.mxu0
        %v1253 = vadd.f32 %v1147, %v1252
        %1254 = vmatmul.f32.gmra.mxu0 %v1191
        %v1255 = vpop.f32.mrf.mxu0
        %v1256 = vadd.f32 %v1147, %v1255
        %1257 = vmatmul.f32.gmra.mxu0 %v1194
        %v1258 = vpop.f32.mrf.mxu0
        %v1259 = vadd.f32 %v1147, %v1258
        %1260 = vdwg.mxu0
        %v1261 = vmax.f32 %v1214, 0.0
        %v1262 = vmax.f32 %v1217, 0.0
        %v1263 = vmax.f32 %v1220, 0.0
        %v1264 = vmax.f32 %v1223, 0.0
        %v1265 = vmax.f32 %v1226, 0.0
        %v1266 = vmax.f32 %v1229, 0.0
        %v1267 = vmax.f32 %v1232, 0.0
        %v1268 = vmax.f32 %v1235, 0.0
        %v1269 = vmax.f32 %v1238, 0.0
        %v1270 = vmax.f32 %v1241, 0.0
        %v1271 = vmax.f32 %v1244, 0.0
        %v1272 = vmax.f32 %v1247, 0.0
        %v1273 = vmax.f32 %v1250, 0.0
        %v1274 = vmax.f32 %v1253, 0.0
        %v1275 = vmax.f32 %v1256, 0.0
        %v1276 = vmax.f32 %v1259, 0.0
        %v1278 = vsel %vm376, %v1261, 0
        %v1281 = vsel %vm376, %v1262, 0
        %v1284 = vsel %vm376, %v1263, 0
        %v1287 = vsel %vm376, %v1264, 0
        %v1290 = vsel %vm376, %v1265, 0
        %v1293 = vsel %vm376, %v1266, 0
        %v1296 = vsel %vm376, %v1267, 0
        %v1299 = vsel %vm376, %v1268, 0
        %v1302 = vsel %vm376, %v1269, 0
        %v1305 = vsel %vm376, %v1270, 0
        %v1308 = vsel %vm376, %v1271, 0
        %v1311 = vsel %vm376, %v1272, 0
        %v1314 = vsel %vm376, %v1273, 0
        %v1317 = vsel %vm376, %v1274, 0
        %v1320 = vsel %vm376, %v1275, 0
        %v1323 = vsel %vm376, %v1276, 0
        %1325 = vmatpush.msra.mxu0 0.0
        %1326 = vmatpush.msra.mxu0 0.0
        %1327 = vmatpush.msra.mxu0 0.0
        %1328 = vmatpush.msra.mxu0 0.0
        %1329 = vmatpush.msra.mxu0 0.0
        %1330 = vmatpush.msra.mxu0 0.0
        %1331 = vmatpush.msra.mxu0 0.0
        %1332 = vmatpush.msra.mxu0 0.0
        %1333 = vmatpush.msra.mxu0 0.0
        %1334 = vmatpush.msra.mxu0 0.0
        %1335 = vmatpush.msra.mxu0 0.0
        %1336 = vmatpush.msra.mxu0 0.0
        %1337 = vmatpush.msra.mxu0 %v1078
        %1338 = vmatpush.msra.mxu0 %v1077
        %1339 = vmatpush.msra.mxu0 %v1076
        %1340 = vmatpush.msra.mxu0 %v1075
        %1341 = vmatmul.f32.gmra.mxu0 %v1278
        %v1342 = vpop.f32.mrf.mxu0
        %v1343 = vadd.f32 0.0, %v1342
        %1344 = vmatmul.f32.gmra.mxu0 %v1281
        %v1345 = vpop.f32.mrf.mxu0
        %v1346 = vadd.f32 0.0, %v1345
        %1347 = vmatmul.f32.gmra.mxu0 %v1284
        %v1348 = vpop.f32.mrf.mxu0
        %v1349 = vadd.f32 0.0, %v1348
        %1350 = vmatmul.f32.gmra.mxu0 %v1287
        %v1351 = vpop.f32.mrf.mxu0
        %v1352 = vadd.f32 0.0, %v1351
        %1353 = vmatmul.f32.gmra.mxu0 %v1290
        %v1354 = vpop.f32.mrf.mxu0
        %v1355 = vadd.f32 0.0, %v1354
        %1356 = vmatmul.f32.gmra.mxu0 %v1293
        %v1357 = vpop.f32.mrf.mxu0
        %v1358 = vadd.f32 0.0, %v1357
        %1359 = vmatmul.f32.gmra.mxu0 %v1296
        %v1360 = vpop.f32.mrf.mxu0
        %v1361 = vadd.f32 0.0, %v1360
        %1362 = vmatmul.f32.gmra.mxu0 %v1299
        %v1363 = vpop.f32.mrf.mxu0
        %v1364 = vadd.f32 0.0, %v1363
        %1365 = vmatmul.f32.gmra.mxu0 %v1302
        %v1366 = vpop.f32.mrf.mxu0
        %v1367 = vadd.f32 0.0, %v1366
        %1368 = vmatmul.f32.gmra.mxu0 %v1305
        %v1369 = vpop.f32.mrf.mxu0
        %v1370 = vadd.f32 0.0, %v1369
        %1371 = vmatmul.f32.gmra.mxu0 %v1308
        %v1372 = vpop.f32.mrf.mxu0
        %v1373 = vadd.f32 0.0, %v1372
        %1374 = vmatmul.f32.gmra.mxu0 %v1311
        %v1375 = vpop.f32.mrf.mxu0
        %v1376 = vadd.f32 0.0, %v1375
        %1377 = vmatmul.f32.gmra.mxu0 %v1314
        %v1378 = vpop.f32.mrf.mxu0
        %v1379 = vadd.f32 0.0, %v1378
        %1380 = vmatmul.f32.gmra.mxu0 %v1317
        %v1381 = vpop.f32.mrf.mxu0
        %v1382 = vadd.f32 0.0, %v1381
        %1383 = vmatmul.f32.gmra.mxu0 %v1320
        %v1384 = vpop.f32.mrf.mxu0
        %v1385 = vadd.f32 0.0, %v1384
        %1386 = vmatmul.f32.gmra.mxu0 %v1323
        %v1387 = vpop.f32.mrf.mxu0
        %v1388 = vadd.f32 0.0, %v1387
        %1389 = vdwg.mxu0
        %1390 = vmatpush.msra.mxu0 %v1388
        %1391 = vmatpush.msra.mxu0 %v1385
        %1392 = vmatpush.msra.mxu0 %v1382
        %1393 = vmatpush.msra.mxu0 %v1379
        %1394 = vmatpush.msra.mxu0 %v1376
        %1395 = vmatpush.msra.mxu0 %v1373
        %1396 = vmatpush.msra.mxu0 %v1370
        %1397 = vmatpush.msra.mxu0 %v1367
        %1398 = vmatpush.msra.mxu0 %v1364
        %1399 = vmatpush.msra.mxu0 %v1361
        %1400 = vmatpush.msra.mxu0 %v1358
        %1401 = vmatpush.msra.mxu0 %v1355
        %1402 = vmatpush.msra.mxu0 %v1352
        %1403 = vmatpush.msra.mxu0 %v1349
        %1404 = vmatpush.msra.mxu0 %v1346
        %1405 = vmatpush.msra.mxu0 %v1343
        %1406 = vmatmul.f32.gmra.mxu0 %v283
        %v1407 = vpop.f32.mrf.mxu0
        %v1408 = vadd.f32 0.0, %v1407
        %1409 = vmatmul.f32.gmra.mxu0 %v284
        %v1410 = vpop.f32.mrf.mxu0
        %v1411 = vadd.f32 0.0, %v1410
        %1412 = vmatmul.f32.gmra.mxu0 %v285
        %v1413 = vpop.f32.mrf.mxu0
        %v1414 = vadd.f32 0.0, %v1413
        %1415 = vmatmul.f32.gmra.mxu0 %v286
        %v1416 = vpop.f32.mrf.mxu0
        %v1417 = vadd.f32 0.0, %v1416
        %1418 = vmatmul.f32.gmra.mxu0 %v287
        %v1419 = vpop.f32.mrf.mxu0
        %v1420 = vadd.f32 0.0, %v1419
        %1421 = vmatmul.f32.gmra.mxu0 %v288
        %v1422 = vpop.f32.mrf.mxu0
        %v1423 = vadd.f32 0.0, %v1422
        %1424 = vmatmul.f32.gmra.mxu0 %v289
        %v1425 = vpop.f32.mrf.mxu0
        %v1426 = vadd.f32 0.0, %v1425
        %1427 = vmatmul.f32.gmra.mxu0 %v290
        %v1428 = vpop.f32.mrf.mxu0
        %v1429 = vadd.f32 0.0, %v1428
        %1430 = vmatmul.f32.gmra.mxu0 %v291
        %v1431 = vpop.f32.mrf.mxu0
        %v1432 = vadd.f32 0.0, %v1431
        %1433 = vmatmul.f32.gmra.mxu0 %v292
        %v1434 = vpop.f32.mrf.mxu0
        %v1435 = vadd.f32 0.0, %v1434
        %1436 = vmatmul.f32.gmra.mxu0 %v293
        %v1437 = vpop.f32.mrf.mxu0
        %v1438 = vadd.f32 0.0, %v1437
        %1439 = vmatmul.f32.gmra.mxu0 %v294
        %v1440 = vpop.f32.mrf.mxu0
        %v1441 = vadd.f32 0.0, %v1440
        %1442 = vmatmul.f32.gmra.mxu0 %v295
        %v1443 = vpop.f32.mrf.mxu0
        %v1444 = vadd.f32 0.0, %v1443
        %1445 = vmatmul.f32.gmra.mxu0 %v296
        %v1446 = vpop.f32.mrf.mxu0
        %v1447 = vadd.f32 0.0, %v1446
        %1448 = vmatmul.f32.gmra.mxu0 %v297
        %v1449 = vpop.f32.mrf.mxu0
        %v1450 = vadd.f32 0.0, %v1449
        %1451 = vmatmul.f32.gmra.mxu0 %v298
        %v1452 = vpop.f32.mrf.mxu0
        %v1453 = vadd.f32 0.0, %v1452
        %1454 = vdwg.mxu0
        %v1455 = vmul.f32 %v1343, %v1343
        %v1456 = vmul.f32 %v1346, %v1346
        %v1457 = vmul.f32 %v1349, %v1349
        %v1458 = vmul.f32 %v1352, %v1352
        %v1459 = vmul.f32 %v1355, %v1355
        %v1460 = vmul.f32 %v1358, %v1358
        %v1461 = vmul.f32 %v1361, %v1361
        %v1462 = vmul.f32 %v1364, %v1364
        %v1463 = vmul.f32 %v1367, %v1367
        %v1464 = vmul.f32 %v1370, %v1370
        %v1465 = vmul.f32 %v1373, %v1373
        %v1466 = vmul.f32 %v1376, %v1376
        %v1467 = vmul.f32 %v1379, %v1379
        %v1468 = vmul.f32 %v1382, %v1382
        %v1469 = vmul.f32 %v1385, %v1385
        %v1470 = vmul.f32 %v1388, %v1388
        %1471 = vmatpush.msra.mxu0 %v1470
        %1472 = vmatpush.msra.mxu0 %v1469
        %1473 = vmatpush.msra.mxu0 %v1468
        %1474 = vmatpush.msra.mxu0 %v1467
        %1475 = vmatpush.msra.mxu0 %v1466
        %1476 = vmatpush.msra.mxu0 %v1465
        %1477 = vmatpush.msra.mxu0 %v1464
        %1478 = vmatpush.msra.mxu0 %v1463
        %1479 = vmatpush.msra.mxu0 %v1462
        %1480 = vmatpush.msra.mxu0 %v1461
        %1481 = vmatpush.msra.mxu0 %v1460
        %1482 = vmatpush.msra.mxu0 %v1459
        %1483 = vmatpush.msra.mxu0 %v1458
        %1484 = vmatpush.msra.mxu0 %v1457
        %1485 = vmatpush.msra.mxu0 %v1456
        %1486 = vmatpush.msra.mxu0 %v1455
        %1487 = vmatmul.f32.gmra.mxu0 %v283
        %v1488 = vpop.f32.mrf.mxu0
        %v1489 = vadd.f32 0.0, %v1488
        %1490 = vmatmul.f32.gmra.mxu0 %v284
        %v1491 = vpop.f32.mrf.mxu0
        %v1492 = vadd.f32 0.0, %v1491
        %1493 = vmatmul.f32.gmra.mxu0 %v285
        %v1494 = vpop.f32.mrf.mxu0
        %v1495 = vadd.f32 0.0, %v1494
        %1496 = vmatmul.f32.gmra.mxu0 %v286
        %v1497 = vpop.f32.mrf.mxu0
        %v1498 = vadd.f32 0.0, %v1497
        %1499 = vmatmul.f32.gmra.mxu0 %v287
        %v1500 = vpop.f32.mrf.mxu0
        %v1501 = vadd.f32 0.0, %v1500
        %1502 = vmatmul.f32.gmra.mxu0 %v288
        %v1503 = vpop.f32.mrf.mxu0
        %v1504 = vadd.f32 0.0, %v1503
        %1505 = vmatmul.f32.gmra.mxu0 %v289
        %v1506 = vpop.f32.mrf.mxu0
        %v1507 = vadd.f32 0.0, %v1506
        %1508 = vmatmul.f32.gmra.mxu0 %v290
        %v1509 = vpop.f32.mrf.mxu0
        %v1510 = vadd.f32 0.0, %v1509
        %1511 = vmatmul.f32.gmra.mxu0 %v291
        %v1512 = vpop.f32.mrf.mxu0
        %v1513 = vadd.f32 0.0, %v1512
        %1514 = vmatmul.f32.gmra.mxu0 %v292
        %v1515 = vpop.f32.mrf.mxu0
        %v1516 = vadd.f32 0.0, %v1515
        %1517 = vmatmul.f32.gmra.mxu0 %v293
        %v1518 = vpop.f32.mrf.mxu0
        %v1519 = vadd.f32 0.0, %v1518
        %1520 = vmatmul.f32.gmra.mxu0 %v294
        %v1521 = vpop.f32.mrf.mxu0
        %v1522 = vadd.f32 0.0, %v1521
        %1523 = vmatmul.f32.gmra.mxu0 %v295
        %v1524 = vpop.f32.mrf.mxu0
        %v1525 = vadd.f32 0.0, %v1524
        %1526 = vmatmul.f32.gmra.mxu0 %v296
        %v1527 = vpop.f32.mrf.mxu0
        %v1528 = vadd.f32 0.0, %v1527
        %1529 = vmatmul.f32.gmra.mxu0 %v297
        %v1530 = vpop.f32.mrf.mxu0
        %v1531 = vadd.f32 0.0, %v1530
        %1532 = vmatmul.f32.gmra.mxu0 %v298
        %v1533 = vpop.f32.mrf.mxu0
        %v1534 = vadd.f32 0.0, %v1533
        %1535 = vdwg.mxu0
        %v1536 = vmul.f32 %v1408, %v1408
        %v1537 = vmul.f32 %v1411, %v1411
        %v1538 = vmul.f32 %v1414, %v1414
        %v1539 = vmul.f32 %v1417, %v1417
        %v1540 = vmul.f32 %v1420, %v1420
        %v1541 = vmul.f32 %v1423, %v1423
        %v1542 = vmul.f32 %v1426, %v1426
        %v1543 = vmul.f32 %v1429, %v1429
        %v1544 = vmul.f32 %v1432, %v1432
        %v1545 = vmul.f32 %v1435, %v1435
        %v1546 = vmul.f32 %v1438, %v1438
        %v1547 = vmul.f32 %v1441, %v1441
        %v1548 = vmul.f32 %v1444, %v1444
        %v1549 = vmul.f32 %v1447, %v1447
        %v1550 = vmul.f32 %v1450, %v1450
        %v1551 = vmul.f32 %v1453, %v1453
        %v1552 = vsub.f32 %v1489, %v1536
        %v1553 = vsub.f32 %v1492, %v1537
        %v1554 = vsub.f32 %v1495, %v1538
        %v1555 = vsub.f32 %v1498, %v1539
        %v1556 = vsub.f32 %v1501, %v1540
        %v1557 = vsub.f32 %v1504, %v1541
        %v1558 = vsub.f32 %v1507, %v1542
        %v1559 = vsub.f32 %v1510, %v1543
        %v1560 = vsub.f32 %v1513, %v1544
        %v1561 = vsub.f32 %v1516, %v1545
        %v1562 = vsub.f32 %v1519, %v1546
        %v1563 = vsub.f32 %v1522, %v1547
        %v1564 = vsub.f32 %v1525, %v1548
        %v1565 = vsub.f32 %v1528, %v1549
        %v1566 = vsub.f32 %v1531, %v1550
        %v1567 = vsub.f32 %v1534, %v1551
        %v1568 = vadd.f32 %v1552, 1e-05
        %v1569 = vadd.f32 %v1553, 1e-05
        %v1570 = vadd.f32 %v1554, 1e-05
        %v1571 = vadd.f32 %v1555, 1e-05
        %v1572 = vadd.f32 %v1556, 1e-05
        %v1573 = vadd.f32 %v1557, 1e-05
        %v1574 = vadd.f32 %v1558, 1e-05
        %v1575 = vadd.f32 %v1559, 1e-05
        %v1576 = vadd.f32 %v1560, 1e-05
        %v1577 = vadd.f32 %v1561, 1e-05
        %v1578 = vadd.f32 %v1562, 1e-05
        %v1579 = vadd.f32 %v1563, 1e-05
        %v1580 = vadd.f32 %v1564, 1e-05
        %v1581 = vadd.f32 %v1565, 1e-05
        %v1582 = vadd.f32 %v1566, 1e-05
        %v1583 = vadd.f32 %v1567, 1e-05
        %v1584 = vrsqrt.pop %v1568
        %v1585 = vmul.f32 %v1584, %v1568
        %v1586 = vmul.f32 %v1585, %v1584
        %v1587 = vmul.f32 0.5, %v1586
        %v1588 = vsub.f32 1.5, %v1587
        %v1589 = vmul.f32 %v1584, %v1588
        %vm1590 = vweird.f32 %v1568
        %vm1591 = vweird.f32 %v1584
        %vm1592 = vmor %vm1590, %vm1591
        %v1593 = vsel %vm1592, %v1584, %v1589
        %v1594 = vrsqrt.pop %v1569
        %v1595 = vmul.f32 %v1594, %v1569
        %v1596 = vmul.f32 %v1595, %v1594
        %v1597 = vmul.f32 0.5, %v1596
        %v1598 = vsub.f32 1.5, %v1597
        %v1599 = vmul.f32 %v1594, %v1598
        %vm1600 = vweird.f32 %v1569
        %vm1601 = vweird.f32 %v1594
        %vm1602 = vmor %vm1600, %vm1601
        %v1603 = vsel %vm1602, %v1594, %v1599
        %v1604 = vrsqrt.pop %v1570
        %v1605 = vmul.f32 %v1604, %v1570
        %v1606 = vmul.f32 %v1605, %v1604
        %v1607 = vmul.f32 0.5, %v1606
        %v1608 = vsub.f32 1.5, %v1607
        %v1609 = vmul.f32 %v1604, %v1608
        %vm1610 = vweird.f32 %v1570
        %vm1611 = vweird.f32 %v1604
        %vm1612 = vmor %vm1610, %vm1611
        %v1613 = vsel %vm1612, %v1604, %v1609
        %v1614 = vrsqrt.pop %v1571
        %v1615 = vmul.f32 %v1614, %v1571
        %v1616 = vmul.f32 %v1615, %v1614
        %v1617 = vmul.f32 0.5, %v1616
        %v1618 = vsub.f32 1.5, %v1617
        %v1619 = vmul.f32 %v1614, %v1618
        %vm1620 = vweird.f32 %v1571
        %vm1621 = vweird.f32 %v1614
        %vm1622 = vmor %vm1620, %vm1621
        %v1623 = vsel %vm1622, %v1614, %v1619
        %v1624 = vrsqrt.pop %v1572
        %v1625 = vmul.f32 %v1624, %v1572
        %v1626 = vmul.f32 %v1625, %v1624
        %v1627 = vmul.f32 0.5, %v1626
        %v1628 = vsub.f32 1.5, %v1627
        %v1629 = vmul.f32 %v1624, %v1628
        %vm1630 = vweird.f32 %v1572
        %vm1631 = vweird.f32 %v1624
        %vm1632 = vmor %vm1630, %vm1631
        %v1633 = vsel %vm1632, %v1624, %v1629
        %v1634 = vrsqrt.pop %v1573
        %v1635 = vmul.f32 %v1634, %v1573
        %v1636 = vmul.f32 %v1635, %v1634
        %v1637 = vmul.f32 0.5, %v1636
        %v1638 = vsub.f32 1.5, %v1637
        %v1639 = vmul.f32 %v1634, %v1638
        %vm1640 = vweird.f32 %v1573
        %vm1641 = vweird.f32 %v1634
        %vm1642 = vmor %vm1640, %vm1641
        %v1643 = vsel %vm1642, %v1634, %v1639
        %v1644 = vrsqrt.pop %v1574
        %v1645 = vmul.f32 %v1644, %v1574
        %v1646 = vmul.f32 %v1645, %v1644
        %v1647 = vmul.f32 0.5, %v1646
        %v1648 = vsub.f32 1.5, %v1647
        %v1649 = vmul.f32 %v1644, %v1648
        %vm1650 = vweird.f32 %v1574
        %vm1651 = vweird.f32 %v1644
        %vm1652 = vmor %vm1650, %vm1651
        %v1653 = vsel %vm1652, %v1644, %v1649
        %v1654 = vrsqrt.pop %v1575
        %v1655 = vmul.f32 %v1654, %v1575
        %v1656 = vmul.f32 %v1655, %v1654
        %v1657 = vmul.f32 0.5, %v1656
        %v1658 = vsub.f32 1.5, %v1657
        %v1659 = vmul.f32 %v1654, %v1658
        %vm1660 = vweird.f32 %v1575
        %vm1661 = vweird.f32 %v1654
        %vm1662 = vmor %vm1660, %vm1661
        %v1663 = vsel %vm1662, %v1654, %v1659
        %v1664 = vrsqrt.pop %v1576
        %v1665 = vmul.f32 %v1664, %v1576
        %v1666 = vmul.f32 %v1665, %v1664
        %v1667 = vmul.f32 0.5, %v1666
        %v1668 = vsub.f32 1.5, %v1667
        %v1669 = vmul.f32 %v1664, %v1668
        %vm1670 = vweird.f32 %v1576
        %vm1671 = vweird.f32 %v1664
        %vm1672 = vmor %vm1670, %vm1671
        %v1673 = vsel %vm1672, %v1664, %v1669
        %v1674 = vrsqrt.pop %v1577
        %v1675 = vmul.f32 %v1674, %v1577
        %v1676 = vmul.f32 %v1675, %v1674
        %v1677 = vmul.f32 0.5, %v1676
        %v1678 = vsub.f32 1.5, %v1677
        %v1679 = vmul.f32 %v1674, %v1678
        %vm1680 = vweird.f32 %v1577
        %vm1681 = vweird.f32 %v1674
        %vm1682 = vmor %vm1680, %vm1681
        %v1683 = vsel %vm1682, %v1674, %v1679
        %v1684 = vrsqrt.pop %v1578
        %v1685 = vmul.f32 %v1684, %v1578
        %v1686 = vmul.f32 %v1685, %v1684
        %v1687 = vmul.f32 0.5, %v1686
        %v1688 = vsub.f32 1.5, %v1687
        %v1689 = vmul.f32 %v1684, %v1688
        %vm1690 = vweird.f32 %v1578
        %vm1691 = vweird.f32 %v1684
        %vm1692 = vmor %vm1690, %vm1691
        %v1693 = vsel %vm1692, %v1684, %v1689
        %v1694 = vrsqrt.pop %v1579
        %v1695 = vmul.f32 %v1694, %v1579
        %v1696 = vmul.f32 %v1695, %v1694
        %v1697 = vmul.f32 0.5, %v1696
        %v1698 = vsub.f32 1.5, %v1697
        %v1699 = vmul.f32 %v1694, %v1698
        %vm1700 = vweird.f32 %v1579
        %vm1701 = vweird.f32 %v1694
        %vm1702 = vmor %vm1700, %vm1701
        %v1703 = vsel %vm1702, %v1694, %v1699
        %v1704 = vrsqrt.pop %v1580
        %v1705 = vmul.f32 %v1704, %v1580
        %v1706 = vmul.f32 %v1705, %v1704
        %v1707 = vmul.f32 0.5, %v1706
        %v1708 = vsub.f32 1.5, %v1707
        %v1709 = vmul.f32 %v1704, %v1708
        %vm1710 = vweird.f32 %v1580
        %vm1711 = vweird.f32 %v1704
        %vm1712 = vmor %vm1710, %vm1711
        %v1713 = vsel %vm1712, %v1704, %v1709
        %v1714 = vrsqrt.pop %v1581
        %v1715 = vmul.f32 %v1714, %v1581
        %v1716 = vmul.f32 %v1715, %v1714
        %v1717 = vmul.f32 0.5, %v1716
        %v1718 = vsub.f32 1.5, %v1717
        %v1719 = vmul.f32 %v1714, %v1718
        %vm1720 = vweird.f32 %v1581
        %vm1721 = vweird.f32 %v1714
        %vm1722 = vmor %vm1720, %vm1721
        %v1723 = vsel %vm1722, %v1714, %v1719
        %v1724 = vrsqrt.pop %v1582
        %v1725 = vmul.f32 %v1724, %v1582
        %v1726 = vmul.f32 %v1725, %v1724
        %v1727 = vmul.f32 0.5, %v1726
        %v1728 = vsub.f32 1.5, %v1727
        %v1729 = vmul.f32 %v1724, %v1728
        %vm1730 = vweird.f32 %v1582
        %vm1731 = vweird.f32 %v1724
        %vm1732 = vmor %vm1730, %vm1731
        %v1733 = vsel %vm1732, %v1724, %v1729
        %v1734 = vrsqrt.pop %v1583
        %v1735 = vmul.f32 %v1734, %v1583
        %v1736 = vmul.f32 %v1735, %v1734
        %v1737 = vmul.f32 0.5, %v1736
        %v1738 = vsub.f32 1.5, %v1737
        %v1739 = vmul.f32 %v1734, %v1738
        %vm1740 = vweird.f32 %v1583
        %vm1741 = vweird.f32 %v1734
        %vm1742 = vmor %vm1740, %vm1741
        %v1743 = vsel %vm1742, %v1734, %v1739
        %v1744 = vperm.slane %v1080, 0
        %v1745 = vmul.f32 %v1744, %v1593
        %v1746 = vmul.f32 %v1744, %v1603
        %v1747 = vmul.f32 %v1744, %v1613
        %v1748 = vmul.f32 %v1744, %v1623
        %v1749 = vmul.f32 %v1744, %v1633
        %v1750 = vmul.f32 %v1744, %v1643
        %v1751 = vmul.f32 %v1744, %v1653
        %v1752 = vmul.f32 %v1744, %v1663
        %v1753 = vmul.f32 %v1744, %v1673
        %v1754 = vmul.f32 %v1744, %v1683
        %v1755 = vmul.f32 %v1744, %v1693
        %v1756 = vmul.f32 %v1744, %v1703
        %v1757 = vmul.f32 %v1744, %v1713
        %v1758 = vmul.f32 %v1744, %v1723
        %v1759 = vmul.f32 %v1744, %v1733
        %v1760 = vmul.f32 %v1744, %v1743
        %v1761 = vmul.f32 %v1408, %v1745
        %v1762 = vmul.f32 %v1411, %v1746
        %v1763 = vmul.f32 %v1414, %v1747
        %v1764 = vmul.f32 %v1417, %v1748
        %v1765 = vmul.f32 %v1420, %v1749
        %v1766 = vmul.f32 %v1423, %v1750
        %v1767 = vmul.f32 %v1426, %v1751
        %v1768 = vmul.f32 %v1429, %v1752
        %v1769 = vmul.f32 %v1432, %v1753
        %v1770 = vmul.f32 %v1435, %v1754
        %v1771 = vmul.f32 %v1438, %v1755
        %v1772 = vmul.f32 %v1441, %v1756
        %v1773 = vmul.f32 %v1444, %v1757
        %v1774 = vmul.f32 %v1447, %v1758
        %v1775 = vmul.f32 %v1450, %v1759
        %v1776 = vmul.f32 %v1453, %v1760
        %v1777 = vperm.slane %v1081, 0
        %v1778 = vsub.f32 %v1777, %v1761
        %v1779 = vsub.f32 %v1777, %v1762
        %v1780 = vsub.f32 %v1777, %v1763
        %v1781 = vsub.f32 %v1777, %v1764
        %v1782 = vsub.f32 %v1777, %v1765
        %v1783 = vsub.f32 %v1777, %v1766
        %v1784 = vsub.f32 %v1777, %v1767
        %v1785 = vsub.f32 %v1777, %v1768
        %v1786 = vsub.f32 %v1777, %v1769
        %v1787 = vsub.f32 %v1777, %v1770
        %v1788 = vsub.f32 %v1777, %v1771
        %v1789 = vsub.f32 %v1777, %v1772
        %v1790 = vsub.f32 %v1777, %v1773
        %v1791 = vsub.f32 %v1777, %v1774
        %v1792 = vsub.f32 %v1777, %v1775
        %v1793 = vsub.f32 %v1777, %v1776
        %v1794 = vmul.f32 %v1343, %v1745
        %v1795 = vmul.f32 %v1346, %v1746
        %v1796 = vmul.f32 %v1349, %v1747
        %v1797 = vmul.f32 %v1352, %v1748
        %v1798 = vmul.f32 %v1355, %v1749
        %v1799 = vmul.f32 %v1358, %v1750
        %v1800 = vmul.f32 %v1361, %v1751
        %v1801 = vmul.f32 %v1364, %v1752
        %v1802 = vmul.f32 %v1367, %v1753
        %v1803 = vmul.f32 %v1370, %v1754
        %v1804 = vmul.f32 %v1373, %v1755
        %v1805 = vmul.f32 %v1376, %v1756
        %v1806 = vmul.f32 %v1379, %v1757
        %v1807 = vmul.f32 %v1382, %v1758
        %v1808 = vmul.f32 %v1385, %v1759
        %v1809 = vmul.f32 %v1388, %v1760
        %v1810 = vadd.f32 %v1794, %v1778
        %v1811 = vadd.f32 %v1795, %v1779
        %v1812 = vadd.f32 %v1796, %v1780
        %v1813 = vadd.f32 %v1797, %v1781
        %v1814 = vadd.f32 %v1798, %v1782
        %v1815 = vadd.f32 %v1799, %v1783
        %v1816 = vadd.f32 %v1800, %v1784
        %v1817 = vadd.f32 %v1801, %v1785
        %v1818 = vadd.f32 %v1802, %v1786
        %v1819 = vadd.f32 %v1803, %v1787
        %v1820 = vadd.f32 %v1804, %v1788
        %v1821 = vadd.f32 %v1805, %v1789
        %v1822 = vadd.f32 %v1806, %v1790
        %v1823 = vadd.f32 %v1807, %v1791
        %v1824 = vadd.f32 %v1808, %v1792
        %v1825 = vadd.f32 %v1809, %v1793
        %v1826 = vmax.f32 %v1810, 0.0
        %v1827 = vmax.f32 %v1811, 0.0
        %v1828 = vmax.f32 %v1812, 0.0
        %v1829 = vmax.f32 %v1813, 0.0
        %v1830 = vmax.f32 %v1814, 0.0
        %v1831 = vmax.f32 %v1815, 0.0
        %v1832 = vmax.f32 %v1816, 0.0
        %v1833 = vmax.f32 %v1817, 0.0
        %v1834 = vmax.f32 %v1818, 0.0
        %v1835 = vmax.f32 %v1819, 0.0
        %v1836 = vmax.f32 %v1820, 0.0
        %v1837 = vmax.f32 %v1821, 0.0
        %v1838 = vmax.f32 %v1822, 0.0
        %v1839 = vmax.f32 %v1823, 0.0
        %v1840 = vmax.f32 %v1824, 0.0
        %v1841 = vmax.f32 %v1825, 0.0
        %v1842 = vld [vmem:[#allocation6 + $0x80] sm:$0xff]
        %v1843 = vld [vmem:[#allocation6 + $0x88] sm:$0xff]
        %v1844 = vld [vmem:[#allocation6 + $0x90] sm:$0xff]
        %v1845 = vld [vmem:[#allocation6 + $0x98] sm:$0xff]
        %v1846 = vld [vmem:[#allocation6 + $0xa6] sm:$0x1]
        %v1847 = vperm.slane %v1846, 0
        %v1849 = vsel %vm376, %v1826, 0
        %v1852 = vsel %vm376, %v1827, 0
        %v1855 = vsel %vm376, %v1828, 0
        %v1858 = vsel %vm376, %v1829, 0
        %v1861 = vsel %vm376, %v1830, 0
        %v1864 = vsel %vm376, %v1831, 0
        %v1867 = vsel %vm376, %v1832, 0
        %v1870 = vsel %vm376, %v1833, 0
        %v1873 = vsel %vm376, %v1834, 0
        %v1876 = vsel %vm376, %v1835, 0
        %v1879 = vsel %vm376, %v1836, 0
        %v1882 = vsel %vm376, %v1837, 0
        %v1885 = vsel %vm376, %v1838, 0
        %v1888 = vsel %vm376, %v1839, 0
        %v1891 = vsel %vm376, %v1840, 0
        %v1894 = vsel %vm376, %v1841, 0
        %1896 = vmatpush.msra.mxu0 0.0
        %1897 = vmatpush.msra.mxu0 0.0
        %1898 = vmatpush.msra.mxu0 0.0
        %1899 = vmatpush.msra.mxu0 0.0
        %1900 = vmatpush.msra.mxu0 0.0
        %1901 = vmatpush.msra.mxu0 0.0
        %1902 = vmatpush.msra.mxu0 0.0
        %1903 = vmatpush.msra.mxu0 0.0
        %1904 = vmatpush.msra.mxu0 0.0
        %1905 = vmatpush.msra.mxu0 0.0
        %1906 = vmatpush.msra.mxu0 0.0
        %1907 = vmatpush.msra.mxu0 0.0
        %1908 = vmatpush.msra.mxu0 %v1845
        %1909 = vmatpush.msra.mxu0 %v1844
        %1910 = vmatpush.msra.mxu0 %v1843
        %1911 = vmatpush.msra.mxu0 %v1842
        %1912 = vmatmul.f32.gmra.mxu0 %v1849
        %v1913 = vpop.f32.mrf.mxu0
        %v1914 = vadd.f32 %v1847, %v1913
        %1915 = vmatmul.f32.gmra.mxu0 %v1852
        %v1916 = vpop.f32.mrf.mxu0
        %v1917 = vadd.f32 %v1847, %v1916
        %1918 = vmatmul.f32.gmra.mxu0 %v1855
        %v1919 = vpop.f32.mrf.mxu0
        %v1920 = vadd.f32 %v1847, %v1919
        %1921 = vmatmul.f32.gmra.mxu0 %v1858
        %v1922 = vpop.f32.mrf.mxu0
        %v1923 = vadd.f32 %v1847, %v1922
        %1924 = vmatmul.f32.gmra.mxu0 %v1861
        %v1925 = vpop.f32.mrf.mxu0
        %v1926 = vadd.f32 %v1847, %v1925
        %1927 = vmatmul.f32.gmra.mxu0 %v1864
        %v1928 = vpop.f32.mrf.mxu0
        %v1929 = vadd.f32 %v1847, %v1928
        %1930 = vmatmul.f32.gmra.mxu0 %v1867
        %v1931 = vpop.f32.mrf.mxu0
        %v1932 = vadd.f32 %v1847, %v1931
        %1933 = vmatmul.f32.gmra.mxu0 %v1870
        %v1934 = vpop.f32.mrf.mxu0
        %v1935 = vadd.f32 %v1847, %v1934
        %1936 = vmatmul.f32.gmra.mxu0 %v1873
        %v1937 = vpop.f32.mrf.mxu0
        %v1938 = vadd.f32 %v1847, %v1937
        %1939 = vmatmul.f32.gmra.mxu0 %v1876
        %v1940 = vpop.f32.mrf.mxu0
        %v1941 = vadd.f32 %v1847, %v1940
        %1942 = vmatmul.f32.gmra.mxu0 %v1879
        %v1943 = vpop.f32.mrf.mxu0
        %v1944 = vadd.f32 %v1847, %v1943
        %1945 = vmatmul.f32.gmra.mxu0 %v1882
        %v1946 = vpop.f32.mrf.mxu0
        %v1947 = vadd.f32 %v1847, %v1946
        %1948 = vmatmul.f32.gmra.mxu0 %v1885
        %v1949 = vpop.f32.mrf.mxu0
        %v1950 = vadd.f32 %v1847, %v1949
        %1951 = vmatmul.f32.gmra.mxu0 %v1888
        %v1952 = vpop.f32.mrf.mxu0
        %v1953 = vadd.f32 %v1847, %v1952
        %1954 = vmatmul.f32.gmra.mxu0 %v1891
        %v1955 = vpop.f32.mrf.mxu0
        %v1956 = vadd.f32 %v1847, %v1955
        %1957 = vmatmul.f32.gmra.mxu0 %v1894
        %v1958 = vpop.f32.mrf.mxu0
        %v1959 = vadd.f32 %v1847, %v1958
        %1960 = vdwg.mxu0
        %1961 = vst [vmem:[%s250] sm:$0xff] %v1914
        %1962 = vst [vmem:[%s250 + $0x8] sm:$0xff] %v1917
        %1963 = vst [vmem:[%s250 + $0x10] sm:$0xff] %v1920
        %1964 = vst [vmem:[%s250 + $0x18] sm:$0xff] %v1923
        %1965 = vst [vmem:[%s250 + $0x20] sm:$0xff] %v1926
        %1966 = vst [vmem:[%s250 + $0x28] sm:$0xff] %v1929
        %1967 = vst [vmem:[%s250 + $0x30] sm:$0xff] %v1932
        %1968 = vst [vmem:[%s250 + $0x38] sm:$0xff] %v1935
        %1969 = vst [vmem:[%s250 + $0x40] sm:$0xff] %v1938
        %1970 = vst [vmem:[%s250 + $0x48] sm:$0xff] %v1941
        %1971 = vst [vmem:[%s250 + $0x50] sm:$0xff] %v1944
        %1972 = vst [vmem:[%s250 + $0x58] sm:$0xff] %v1947
        %1973 = vst [vmem:[%s250 + $0x60] sm:$0xff] %v1950
        %1974 = vst [vmem:[%s250 + $0x68] sm:$0xff] %v1953
        %1975 = vst [vmem:[%s250 + $0x70] sm:$0xff] %v1956
        %1976 = vst [vmem:[%s250 + $0x78] sm:$0xff] %v1959
        %p1977 = scmp.lt.s32.totalorder %s20, 3
        %s1978 = scalar_select %p1977, %s20, 3
        %s1979 = smul.addr %s1978, 16
        %s1980 = smul.addr %s1979, 8
        %s1981 = scalar_lea.vmem %s3, %s1980
        // Predicated region
        $region45: #{gin_forward.1} parent=31 // pred_check
          %p1982 = pneg %p111
        $region46: #{gin_forward.1} parent=31 // pred_check_branch
          %1984 = sbr.rel (%p1982) target = $region48
        $region47: #{gin_forward.1} parent=31 // pred_region
          _
        $region48: #{gin_forward.1} parent=31 // pred_fallthru
          _
      $region32: #{gin_forward.1} parent=5 // pred_fallthru
        _
      %p1985 = scmp.le.s32.totalorder 2, %s15
      // Predicated region
      $region49: #{gin_forward.1} parent=5 // pred_check
        %p1986 = pneg %p1985
      $region50: #{gin_forward.1} parent=5 // pred_check_branch
        %1988 = sbr.rel (%p1986) target = $region52
      $region51: #{gin_forward.1} parent=5 // pred_region
        %s1989 = ssub.s32 %s15, 2
        // Predicated region
        $region53: #{gin_forward.1} parent=51 // pred_check
          %p1990 = pneg %p117
        $region54: #{gin_forward.1} parent=51 // pred_check_branch
          %1992 = sbr.rel (%p1990) target = $region56
        $region55: #{gin_forward.1} parent=51 // pred_region
          %p1993 = scmp.lt.s32.totalorder %s21, 3
          %s1994 = scalar_select %p1993, %s21, 3
          %s1995 = smul.addr %s1994, 16
          %s1996 = smul.addr %s1995, 8
          %s1997 = scalar_lea.vmem %s3, %s1996
        $region56: #{gin_forward.1} parent=51 // pred_fallthru
          _
      $region52: #{gin_forward.1} parent=5 // pred_fallthru
        _
    $region6: #{gin_forward.1} parent=1 // loop_footer
      %s19 = sadd.s32 1, %s15
    $region7: #{gin_forward.1} parent=1 // loop_footer_branch
      %14 = sbr.rel target = $region3
    $region8: #{gin_forward.1} parent=1 // loop_exit
      _
    %1998 = vsyncpa [#allocation3], 1
    %s1999 = scalar_lea.sflag [#allocation3], 1
    %2000 = vsyncpa %s1999, 1
    %2001 = vsyncpa [#allocation5], 1
    %s2002 = scalar_lea.sflag [#allocation5], 1
    %2003 = vsyncpa %s2002, 1

</llo_original>
